<compile_context>
chip_gen: v7x
topology: tpu7x:2x2x1
jax: 0.10.0
libtpu: 0.0.40
codegen_flags: <defaults>
</compile_context>

<pallas_src>
import jax
import jax.numpy as jnp
from jax.experimental import pallas as pl
from jax.experimental.pallas import tpu as pltpu

_VMEM_LIMIT = 32 * 1024 * 1024  # safe on v5e/v6e (128 MiB) and v7x (64 MiB physical)


# ---------------------------------------------------------------------------
# Pallas kernels
# ---------------------------------------------------------------------------
def _film_msg_kernel(x_ref, wall_ref, m_ref):
    """FiLM messages for ALL edge types from one stacked matmul.

    x_ref:    (TM, Din)           bf16
    wall_ref: (Din, E*3*Dout)     bf16   columns per e: [W_e | Fg_e | Fb_e]
    m_ref:    (E, TM, Dout)       bf16
    """
    E, _, d = m_ref.shape
    z = jnp.dot(x_ref[...], wall_ref[...], preferred_element_type=jnp.float32)
    for e in range(E):                      # static, small E
        ze = z[:, e * 3 * d:(e + 1) * 3 * d]
        msg = ze[:, :d]
        gamma = ze[:, d:2 * d]
        beta = ze[:, 2 * d:]
        m_ref[e] = jnp.maximum(gamma * msg + beta, 0.0).astype(m_ref.dtype)


def _agg_ln_kernel(a_ref, m_ref, lnw_ref, lnb_ref, out_ref, acc_ref):
    """h_tile = LayerNorm( Acat_tile @ Mcat ), accumulated in f32 scratch over K."""
    k = pl.program_id(1)
    part = jnp.dot(a_ref[...], m_ref[...], preferred_element_type=jnp.float32)

    @pl.when(k == 0)
    def _():
        acc_ref[...] = part            # write-first: no zero-fill + add

    @pl.when(k > 0)
    def _():
        acc_ref[...] += part

    @pl.when(k == pl.num_programs(1) - 1)
    def _():
        h = acc_ref[...]
        mean = jnp.mean(h, axis=-1, keepdims=True)
        var = jnp.mean((h - mean) ** 2, axis=-1, keepdims=True)
        hn = (h - mean) * jax.lax.rsqrt(var + 1e-5)
        # TODO(synk): dropout is identity (eval mode); no stochastic mask applied.
        out_ref[...] = (hn * lnw_ref[...] + lnb_ref[...]).astype(out_ref.dtype)


def _agg_ln_head_kernel(a_ref, m_ref, lnw_ref, lnb_ref, wp_ref, bp_ref,
                        out_ref, acc_ref):
    """Last layer: aggregation + LayerNorm + predict Linear + sigmoid, fused."""
    k = pl.program_id(1)
    part = jnp.dot(a_ref[...], m_ref[...], preferred_element_type=jnp.float32)

    @pl.when(k == 0)
    def _():
        acc_ref[...] = part

    @pl.when(k > 0)
    def _():
        acc_ref[...] += part

    @pl.when(k == pl.num_programs(1) - 1)
    def _():
        h = acc_ref[...]
        mean = jnp.mean(h, axis=-1, keepdims=True)
        var = jnp.mean((h - mean) ** 2, axis=-1, keepdims=True)
        hn = (h - mean) * jax.lax.rsqrt(var + 1e-5)
        hn = hn * lnw_ref[...] + lnb_ref[...]
        # TODO(synk): dropout is identity (eval mode); no stochastic mask applied.
        y = jnp.dot(hn, wp_ref[...], preferred_element_type=jnp.float32) + bp_ref[...]
        out_ref[...] = jax.nn.sigmoid(y).astype(out_ref.dtype)


# ---------------------------------------------------------------------------
# Tiling helpers
# ---------------------------------------------------------------------------
def _row_tile(n, tm=128):
    # TODO(synk): pad / tail-handle instead of falling back to one giant tile when
    # N is not a multiple of 128.
    return tm if (n % tm == 0) else n


def _choose_tk(K, N, TM, Dout, budget_bytes=4 * 1024 * 1024):
    """K tile for the aggregation matmul: whole edge types per step, biggest fit."""
    if N % 128 != 0:
        return K                      # only the full (untiled) contraction is legal
    E = K // N
    for g in range(E, 0, -1):         # largest whole-etype group that fits VMEM budget
        if E % g:
            continue
        tk = g * N
        if 2 * 2 * (TM * tk + tk * Dout) <= budget_bytes:   # bf16, double-buffered
            return tk
    # TODO(synk): for very large N a sub-N (128-aligned) K tile would be needed.
    return N


# ---------------------------------------------------------------------------
# Wrappers
# ---------------------------------------------------------------------------
def gnn_film_messages(x, Wall, n_etypes, dout, *, tm=128):
    """x: [N, Din] bf16; Wall: [Din, E*3*Dout] bf16  ->  Mcat: [E*N, Dout] bf16."""
    N, Din = x.shape
    D3E = Wall.shape[1]
    TM = _row_tile(N, tm)
    M = pl.pallas_call(
        _film_msg_kernel,
        out_shape=jax.ShapeDtypeStruct((n_etypes, N, dout), jnp.bfloat16),
        grid_spec=pltpu.PrefetchScalarGridSpec(
            num_scalar_prefetch=0,
            grid=(N // TM,),
            in_specs=[
                pl.BlockSpec((TM, Din), lambda i: (i, 0)),       # row tile of X
                pl.BlockSpec((Din, D3E), lambda i: (0, 0)),      # stacked W|Fg|Fb, all e
            ],
            out_specs=pl.BlockSpec((n_etypes, TM, dout), lambda i: (0, i, 0)),
        ),
        compiler_params=pltpu.CompilerParams(
            dimension_semantics=("parallel",),
            vmem_limit_bytes=_VMEM_LIMIT),
    )(x, Wall)
    # Contiguous reshape: Mcat[e*N + s, :] = M[e, s, :]
    return M.reshape(n_etypes * N, dout)


def gnn_film_aggregate(Acat, Mcat, ln_w, ln_b, *, tm=128):
    """LayerNorm( Acat @ Mcat ), output bf16.  Acat: [N, E*N] bf16, Mcat: [E*N, D] bf16."""
    N, K = Acat.shape
    Dout = Mcat.shape[1]
    TM = _row_tile(N, tm)
    TK = _choose_tk(K, N, TM, Dout)
    return pl.pallas_call(
        _agg_ln_kernel,
        out_shape=jax.ShapeDtypeStruct((N, Dout), jnp.bfloat16),
        grid_spec=pltpu.PrefetchScalarGridSpec(
            num_scalar_prefetch=0,
            grid=(N // TM, K // TK),
            in_specs=[
                pl.BlockSpec((TM, TK), lambda i, k: (i, k)),
                pl.BlockSpec((TK, Dout), lambda i, k: (k, 0)),
                pl.BlockSpec((1, Dout), lambda i, k: (0, 0)),
                pl.BlockSpec((1, Dout), lambda i, k: (0, 0)),
            ],
            out_specs=pl.BlockSpec((TM, Dout), lambda i, k: (i, 0)),
            scratch_shapes=[pltpu.VMEM((TM, Dout), jnp.float32)],
        ),
        compiler_params=pltpu.CompilerParams(
            dimension_semantics=("parallel", "arbitrary"),
            vmem_limit_bytes=_VMEM_LIMIT),
    )(Acat, Mcat, ln_w, ln_b)


def gnn_film_aggregate_head(Acat, Mcat, ln_w, ln_b, Wp, bp, *, tm=128):
    """Last layer: sigmoid( LayerNorm(Acat @ Mcat) @ Wp + bp ), output f32."""
    N, K = Acat.shape
    Dh = Mcat.shape[1]
    P = Wp.shape[1]
    TM = _row_tile(N, tm)
    TK = _choose_tk(K, N, TM, Dh)
    return pl.pallas_call(
        _agg_ln_head_kernel,
        out_shape=jax.ShapeDtypeStruct((N, P), jnp.float32),
        grid_spec=pltpu.PrefetchScalarGridSpec(
            num_scalar_prefetch=0,
            grid=(N // TM, K // TK),
            in_specs=[
                pl.BlockSpec((TM, TK), lambda i, k: (i, k)),
                pl.BlockSpec((TK, Dh), lambda i, k: (k, 0)),
                pl.BlockSpec((1, Dh), lambda i, k: (0, 0)),
                pl.BlockSpec((1, Dh), lambda i, k: (0, 0)),
                pl.BlockSpec((Dh, P), lambda i, k: (0, 0)),
                pl.BlockSpec((1, P), lambda i, k: (0, 0)),
            ],
            out_specs=pl.BlockSpec((TM, P), lambda i, k: (i, 0)),
            scratch_shapes=[pltpu.VMEM((TM, Dh), jnp.float32)],
        ),
        compiler_params=pltpu.CompilerParams(
            dimension_semantics=("parallel", "arbitrary"),
            vmem_limit_bytes=_VMEM_LIMIT),
    )(Acat, Mcat, ln_w, ln_b, Wp, bp)


def gnn_film_forward(x, A, params):
    """Full GNNFiLM forward: stacked FiLM layers, predict head fused into last layer."""
    E, N, _ = A.shape
    # sum_e A_e @ M_e  ==  Acat @ Mcat  with the src axis of all edge types concatenated.
    Acat = jnp.transpose(A, (1, 0, 2)).reshape(N, E * N)
    h = x.astype(jnp.bfloat16)                 # bf16 activations end-to-end
    layers = params["layers"]
    for layer in layers[:-1]:
        Mcat = gnn_film_messages(h, layer["Wall"], E, layer["dout"])
        h = gnn_film_aggregate(Acat, Mcat, layer["ln_w"], layer["ln_b"])
    last = layers[-1]
    Mcat = gnn_film_messages(h, last["Wall"], E, last["dout"])
    return gnn_film_aggregate_head(Acat, Mcat, last["ln_w"], last["ln_b"],
                                   params["Wp"], params["bp"])


# ---------------------------------------------------------------------------
# Deterministic parameter init (PyTorch-Linear-style uniform bounds)
# ---------------------------------------------------------------------------
def _init_params(key, n_etypes, in_size, hidden_size, out_size, num_layers):
    params = {"layers": []}
    din = in_size
    for _ in range(num_layers):
        key, kw, kg, kb = jax.random.split(key, 4)
        bound = 1.0 / jnp.sqrt(din)
        W = jax.random.uniform(kw, (n_etypes, din, hidden_size), jnp.float32, -bound, bound)
        Fg = jax.random.uniform(kg, (n_etypes, din, hidden_size), jnp.float32, -bound, bound)
        Fb = jax.random.uniform(kb, (n_etypes, din, hidden_size), jnp.float32, -bound, bound)
        # Per edge type fuse (W | Fg | Fb) on the output dim, then stack all edge types:
        #   Wall[:, e*3*D:(e+1)*3*D] = [W_e | Fg_e | Fb_e]
        wcat = jnp.concatenate([W, Fg, Fb], axis=-1)                   # [E, Din, 3D]
        wall = jnp.transpose(wcat, (1, 0, 2)).reshape(din, n_etypes * 3 * hidden_size)
        params["layers"].append({
            "Wall": wall.astype(jnp.bfloat16),
            "dout": hidden_size,
            "ln_w": jnp.ones((1, hidden_size), jnp.float32),
            "ln_b": jnp.zeros((1, hidden_size), jnp.float32),
        })
        din = hidden_size
    key, kp, kpb = jax.random.split(key, 3)
    bound = 1.0 / jnp.sqrt(hidden_size)
    params["Wp"] = jax.random.uniform(kp, (hidden_size, out_size), jnp.float32, -bound, bound)
    params["bp"] = jax.random.uniform(kpb, (1, out_size), jnp.float32, -bound, bound)
    return params


# ---------------------------------------------------------------------------
# Pure-JAX reference (per-edge-type formulation, same bf16/f32 precision regime)
# ---------------------------------------------------------------------------
def _reference_forward(x, A, params):
    E = A.shape[0]
    layers = params["layers"]
    h = x.astype(jnp.bfloat16)
    for li, layer in enumerate(layers):
        Wall = layer["Wall"]
        d = layer["dout"]
        acc = jnp.zeros((h.shape[0], d), jnp.float32)
        for e in range(E):
            We = Wall[:, e * 3 * d:e * 3 * d + d]
            Fge = Wall[:, e * 3 * d + d:e * 3 * d + 2 * d]
            Fbe = Wall[:, e * 3 * d + 2 * d:(e + 1) * 3 * d]
            msg = jnp.dot(h, We, preferred_element_type=jnp.float32)
            gamma = jnp.dot(h, Fge, preferred_element_type=jnp.float32)
            beta = jnp.dot(h, Fbe, preferred_element_type=jnp.float32)
            m = jnp.maximum(gamma * msg + beta, 0.0).astype(jnp.bfloat16)
            acc = acc + jnp.dot(A[e], m, preferred_element_type=jnp.float32)
        mean = jnp.mean(acc, axis=-1, keepdims=True)
        var = jnp.mean((acc - mean) ** 2, axis=-1, keepdims=True)
        hn = (acc - mean) * jax.lax.rsqrt(var + 1e-5) * layer["ln_w"] + layer["ln_b"]
        h = hn.astype(jnp.bfloat16) if li < len(layers) - 1 else hn
    y = jnp.dot(h, params["Wp"], preferred_element_type=jnp.float32) + params["bp"]
    return jax.nn.sigmoid(y)


# ---------------------------------------------------------------------------
if __name__ == "__main__":
    # Small synthetic shapes consistent with the module's forward (lane-dense hidden).
    N = 256                 # nodes (single node type)
    N_ETYPES = 3            # edge types
    IN_SIZE = 64
    HIDDEN = 128            # multiple of 128 keeps FiLM slices on vreg boundaries
    OUT_SIZE = 8
    NUM_LAYERS = 2

    key = jax.random.PRNGKey(0)
    key, kx, ka, kp = jax.random.split(key, 4)

    x = jax.random.normal(kx, (N, IN_SIZE), jnp.float32)
    # Dense per-etype adjacency (dst x src), Bernoulli(0.3); bf16 is exact for 0/1.
    # TODO(synk): real sparse graphs should use a scalar-prefetched edge/segment-list
    # gather-accumulate instead of dense adjacency matmuls.
    A = jax.random.bernoulli(ka, 0.3, (N_ETYPES, N, N)).astype(jnp.bfloat16)

    params = _init_params(kp, N_ETYPES, IN_SIZE, HIDDEN, OUT_SIZE, NUM_LAYERS)

    out = gnn_film_forward(x, A, params)
    out = jax.block_until_ready(out)

    ref = _reference_forward(x, A, params)
    assert out.shape == (N, OUT_SIZE)
    assert jnp.allclose(out, ref, atol=5e-3, rtol=5e-3), "mismatch vs reference"

    print("KERNEL_OK")
</pallas_src>

<mosaic_0001>
module attributes {stable_mosaic.version = 11 : i64} {
  func.func @_film_msg_kernel(%arg0: i32, %arg1: memref<128x64xbf16, #tpu.memory_space<vmem>>, %arg2: memref<64x1152xbf16, #tpu.memory_space<vmem>>, %arg3: memref<3x128x128xbf16, #tpu.memory_space<vmem>>) attributes {dimension_semantics = [#tpu.dimension_semantics<parallel>], iteration_bounds = array<i64: 2>, scalar_prefetch = 0 : i64, scratch_operands = 0 : i64, tpu.core_type = #tpu.core_type<tc>, window_params = [{transform_indices = @transform_0, window_bounds = array<i64: 128, 64>}, {pipeline_mode = #tpu.pipeline_mode<synchronous>, transform_indices = @transform_1, window_bounds = array<i64: 64, 1152>}, {transform_indices = @transform_2, window_bounds = array<i64: 3, 128, 128>}]} {
    %c0 = arith.constant 0 : index
    %c0_0 = arith.constant 0 : index
    %0 = vector.load %arg1[%c0, %c0_0] : memref<128x64xbf16, #tpu.memory_space<vmem>>, vector<128x64xbf16>
    %c0_1 = arith.constant 0 : index
    %c0_2 = arith.constant 0 : index
    %1 = vector.load %arg2[%c0_1, %c0_2] : memref<64x1152xbf16, #tpu.memory_space<vmem>>, vector<64x1152xbf16>
    %cst = arith.constant dense<0.000000e+00> : vector<128x1152xf32>
    %2 = tpu.matmul %0, %1, %cst {dimension_numbers = #tpu.dot_dimension_numbers<[1], [0], [0], [1], [0, 0, 1, 1], [], []>} : vector<128x64xbf16>, vector<64x1152xbf16>, vector<128x1152xf32> -> vector<128x1152xf32>
    %3 = vector.extract_strided_slice %2 {offsets = [0, 0], sizes = [128, 384], strides = [1, 1]} : vector<128x1152xf32> to vector<128x384xf32>
    %4 = vector.extract_strided_slice %3 {offsets = [0, 0], sizes = [128, 128], strides = [1, 1]} : vector<128x384xf32> to vector<128x128xf32>
    %5 = vector.extract_strided_slice %3 {offsets = [0, 128], sizes = [128, 128], strides = [1, 1]} : vector<128x384xf32> to vector<128x128xf32>
    %6 = vector.extract_strided_slice %3 {offsets = [0, 256], sizes = [128, 128], strides = [1, 1]} : vector<128x384xf32> to vector<128x128xf32>
    %7 = arith.mulf %5, %4 : vector<128x128xf32>
    %8 = arith.addf %7, %6 : vector<128x128xf32>
    %cst_3 = arith.constant 0.000000e+00 : f32
    %9 = vector.broadcast %cst_3 : f32 to vector<128x128xf32>
    %10 = arith.maximumf %8, %9 : vector<128x128xf32>
    %11 = arith.truncf %10 : vector<128x128xf32> to vector<128x128xbf16>
    %c0_4 = arith.constant 0 : index
    %c0_5 = arith.constant 0 : index
    %c0_6 = arith.constant 0 : index
    %12 = vector.load %arg3[%c0_4, %c0_5, %c0_6] : memref<3x128x128xbf16, #tpu.memory_space<vmem>>, vector<1x128x128xbf16>
    %13 = vector.shape_cast %12 : vector<1x128x128xbf16> to vector<128x128xbf16>
    %14 = vector.shape_cast %11 : vector<128x128xbf16> to vector<1x128x128xbf16>
    tpu.vector_store %arg3[%c0_4, %c0_5, %c0_6], %14 {strides = array<i32>} : memref<3x128x128xbf16, #tpu.memory_space<vmem>>, vector<1x128x128xbf16>,
    %15 = vector.extract_strided_slice %2 {offsets = [0, 384], sizes = [128, 384], strides = [1, 1]} : vector<128x1152xf32> to vector<128x384xf32>
    %16 = vector.extract_strided_slice %15 {offsets = [0, 0], sizes = [128, 128], strides = [1, 1]} : vector<128x384xf32> to vector<128x128xf32>
    %17 = vector.extract_strided_slice %15 {offsets = [0, 128], sizes = [128, 128], strides = [1, 1]} : vector<128x384xf32> to vector<128x128xf32>
    %18 = vector.extract_strided_slice %15 {offsets = [0, 256], sizes = [128, 128], strides = [1, 1]} : vector<128x384xf32> to vector<128x128xf32>
    %19 = arith.mulf %17, %16 : vector<128x128xf32>
    %20 = arith.addf %19, %18 : vector<128x128xf32>
    %cst_7 = arith.constant 0.000000e+00 : f32
    %21 = vector.broadcast %cst_7 : f32 to vector<128x128xf32>
    %22 = arith.maximumf %20, %21 : vector<128x128xf32>
    %23 = arith.truncf %22 : vector<128x128xf32> to vector<128x128xbf16>
    %c1 = arith.constant 1 : index
    %c0_8 = arith.constant 0 : index
    %c0_9 = arith.constant 0 : index
    %24 = vector.load %arg3[%c1, %c0_8, %c0_9] : memref<3x128x128xbf16, #tpu.memory_space<vmem>>, vector<1x128x128xbf16>
    %25 = vector.shape_cast %24 : vector<1x128x128xbf16> to vector<128x128xbf16>
    %26 = vector.shape_cast %23 : vector<128x128xbf16> to vector<1x128x128xbf16>
    tpu.vector_store %arg3[%c1, %c0_8, %c0_9], %26 {strides = array<i32>} : memref<3x128x128xbf16, #tpu.memory_space<vmem>>, vector<1x128x128xbf16>,
    %27 = vector.extract_strided_slice %2 {offsets = [0, 768], sizes = [128, 384], strides = [1, 1]} : vector<128x1152xf32> to vector<128x384xf32>
    %28 = vector.extract_strided_slice %27 {offsets = [0, 0], sizes = [128, 128], strides = [1, 1]} : vector<128x384xf32> to vector<128x128xf32>
    %29 = vector.extract_strided_slice %27 {offsets = [0, 128], sizes = [128, 128], strides = [1, 1]} : vector<128x384xf32> to vector<128x128xf32>
    %30 = vector.extract_strided_slice %27 {offsets = [0, 256], sizes = [128, 128], strides = [1, 1]} : vector<128x384xf32> to vector<128x128xf32>
    %31 = arith.mulf %29, %28 : vector<128x128xf32>
    %32 = arith.addf %31, %30 : vector<128x128xf32>
    %cst_10 = arith.constant 0.000000e+00 : f32
    %33 = vector.broadcast %cst_10 : f32 to vector<128x128xf32>
    %34 = arith.maximumf %32, %33 : vector<128x128xf32>
    %35 = arith.truncf %34 : vector<128x128xf32> to vector<128x128xbf16>
    %c2 = arith.constant 2 : index
    %c0_11 = arith.constant 0 : index
    %c0_12 = arith.constant 0 : index
    %36 = vector.load %arg3[%c2, %c0_11, %c0_12] : memref<3x128x128xbf16, #tpu.memory_space<vmem>>, vector<1x128x128xbf16>
    %37 = vector.shape_cast %36 : vector<1x128x128xbf16> to vector<128x128xbf16>
    %38 = vector.shape_cast %35 : vector<128x128xbf16> to vector<1x128x128xbf16>
    tpu.vector_store %arg3[%c2, %c0_11, %c0_12], %38 {strides = array<i32>} : memref<3x128x128xbf16, #tpu.memory_space<vmem>>, vector<1x128x128xbf16>,
    return
  }
  func.func @transform_0(%arg0: i32) -> (i32, i32) {
    %c0_i32 = arith.constant 0 : i32
    %c0_i32_0 = arith.constant 0 : i32
    return %arg0, %c0_i32 : i32, i32
  }
  func.func @transform_1(%arg0: i32) -> (i32, i32) {
    %c0_i32 = arith.constant 0 : i32
    %c0_i32_0 = arith.constant 0 : i32
    %c0_i32_1 = arith.constant 0 : i32
    return %c0_i32, %c0_i32_0 : i32, i32
  }
  func.func @transform_2(%arg0: i32) -> (i32, i32, i32) {
    %c0_i32 = arith.constant 0 : i32
    %c0_i32_0 = arith.constant 0 : i32
    %c0_i32_1 = arith.constant 0 : i32
    return %c0_i32, %arg0, %c0_i32_0 : i32, i32, i32
  }
}

</mosaic_0001>

<llo_original>
// kernel: tpu_custom_call.1
$region0: #{tpu_custom_call.1}
  #allocation0 [shape = 'u32[]', space=smem, size = 0x4, offset = 0x4, fixed_abs, tag = 'smem constant byte address 0x4 - core index']
  #allocation1 [shape = 'u32[144,128]{1,0:T(1,128)}', space=vmem, size = 0x12000, scoped, tag = 'internal scratch']
  #allocation6 [shape = 's32[]', space=sflag, size = 0x4, offset = 0, fixed_abs, tag = 'sflag constant byte address 0x0 - dummy sync flag']
  %s0 = inlined_call_operand.vmem [shape: bf16[256,64], index: 0, kind: input, shape index: {}]
  %s1 = inlined_call_operand.hbm [shape: bf16[64,1152], index: 1, kind: input, shape index: {}]
  %s2 = inlined_call_operand.hbm [shape: bf16[3,256,128], index: 2, kind: output, shape index: {}]
  %s3 = sld [smem:[#allocation0]]
  $region45: #{tpu_custom_call.1} parent=0
    _
  %s5 = ssub.s32 1, %s3
  %s6 = scalar_select 0, %s5, %s3
  $region1: #{tpu_custom_call.1} parent=0
    #allocation2 [shape = 'u8[147456]{0}', space=vmem, size = 0x24000, scoped, tag = 'input window, operand 1, single buffered']
    #allocation3 [shape = 's32[2]{0}', space=sflag, size = 0x8, scoped, tag = 'scoped memory for tpu_custom_call.1']
    #allocation4 [shape = 's32[2]{0}', space=sflag, size = 0x8, scoped, tag = 'scoped memory for tpu_custom_call.1']
    #allocation5 [shape = 'u8[196608]{0}', space=vmem, size = 0x30000, scoped, tag = 'output window, operand 0']
    %7 = vsyncpa [#allocation3], 0
    %8 = vsyncpa [#allocation4], 0
    %s9 = scalar_lea.sflag [#allocation4], 1
    %10 = vsyncpa %s9, 0
    loop: start=0, step=1, limit=4
    $region2: #{tpu_custom_call.1} parent=1 // loop_pre_header
      _
    $region3: #{tpu_custom_call.1} parent=1 // loop_header
      %s12 = sphi 0, %s16
      %p13 = scmp.ge.s32.totalorder %s12, 4
      %s22 = sphi 0, %s24
      %s25 = sphi 0, %s22
      %s26 = sphi 0, %s25
      %s42 = sphi 0, %s26
      %s46 = sphi 0, %s46
      %s48 = sphi 0, %s46
      %s49 = sphi 0, %s48
      %s63 = sphi 0, %s49
      %s69 = sphi 0, %s71
      %s72 = sphi 0, %s69
      %s73 = sphi 0, %s72
      %s89 = sphi 0, %s73
    $region4: #{tpu_custom_call.1} parent=1 // loop_header_branch
      %15 = sbr.rel (%p13) target = $region8
    $region5: #{tpu_custom_call.1} parent=1 // loop_body
      %s17 = ssub.s32 %s12, 1
      %s18 = ssub.s32 %s12, 2
      %s19 = sadd.s32 %s12, 1
      %s20 = ssub.s32 %s12, %s19
      %p21 = scmp.eq.s32.totalorder %s20, 0
      %s23 = sadd.s32 %s22, 1
      %s24 = scalar_select %p21, %s22, %s23
      %p27 = pneg %p21
      %p28 = scmp.eq.s32.totalorder %s12, 1
      %p29 = por %p27, %p28
      %p30 = scmp.ne.s32.totalorder %s22, %s25
      %p31 = scmp.eq.s32.totalorder %s12, 0
      %p32 = por %p30, %p31
      %p33 = scmp.ne.s32.totalorder %s22, %s25
      %p34 = scmp.eq.s32.totalorder %s17, 1
      %p35 = por %p33, %p34
      %p36 = scmp.ne.s32.totalorder %s25, %s26
      %p37 = scmp.eq.s32.totalorder %s17, 0
      %p38 = por %p36, %p37
      %p39 = scmp.ne.s32.totalorder %s25, %s26
      %p40 = scmp.eq.s32.totalorder %s18, 1
      %p41 = por %p39, %p40
      %p43 = scmp.ne.s32.totalorder %s26, %s42
      %p44 = scmp.eq.s32.totalorder %s18, 0
      %p45 = por %p43, %p44
      %s47 = sadd.s32 %s46, 1
      %p50 = scmp.eq.s32.totalorder %s12, 1
      %p51 = scmp.ne.s32.totalorder %s46, %s48
      %p52 = scmp.eq.s32.totalorder %s12, 0
      %p53 = por %p51, %p52
      %p54 = scmp.ne.s32.totalorder %s46, %s48
      %p55 = scmp.eq.s32.totalorder %s17, 1
      %p56 = por %p54, %p55
      %p57 = scmp.ne.s32.totalorder %s48, %s49
      %p58 = scmp.eq.s32.totalorder %s17, 0
      %p59 = por %p57, %p58
      %p60 = scmp.ne.s32.totalorder %s48, %s49
      %p61 = scmp.eq.s32.totalorder %s18, 1
      %p62 = por %p60, %p61
      %p64 = scmp.ne.s32.totalorder %s49, %s63
      %p65 = scmp.eq.s32.totalorder %s18, 0
      %p66 = por %p64, %p65
      %s67 = ssub.s32 %s12, %s19
      %p68 = scmp.eq.s32.totalorder %s67, 0
      %s70 = sadd.s32 %s69, 1
      %s71 = scalar_select %p68, %s69, %s70
      %p74 = pneg %p68
      %p75 = scmp.eq.s32.totalorder %s12, 1
      %p76 = por %p74, %p75
      %p77 = scmp.ne.s32.totalorder %s69, %s72
      %p78 = scmp.eq.s32.totalorder %s12, 0
      %p79 = por %p77, %p78
      %p80 = scmp.ne.s32.totalorder %s69, %s72
      %p81 = scmp.eq.s32.totalorder %s17, 1
      %p82 = por %p80, %p81
      %p83 = scmp.ne.s32.totalorder %s72, %s73
      %p84 = scmp.eq.s32.totalorder %s17, 0
      %p85 = por %p83, %p84
      %p86 = scmp.ne.s32.totalorder %s72, %s73
      %p87 = scmp.eq.s32.totalorder %s18, 1
      %p88 = por %p86, %p87
      %p90 = scmp.ne.s32.totalorder %s73, %s89
      %p91 = scmp.eq.s32.totalorder %s18, 0
      %p92 = por %p90, %p91
      %p93 = scmp.le.s32.totalorder 1, %s12
      %p94 = scmp.lt.s32.totalorder %s12, 3
      %p95 = pnand %p93, %p94
      %p96 = pneg %p95
      // Predicated region
      $region9: #{tpu_custom_call.1} parent=5 // pred_check
        _
      $region10: #{tpu_custom_call.1} parent=5 // pred_check_branch
        %98 = sbr.rel (%p95) target = $region12
      $region11: #{tpu_custom_call.1} parent=5 // pred_region
        %s99 = ssub.s32 %s12, 1
        // Predicated region
        $region13: #{tpu_custom_call.1} parent=11 // pred_check
          %p100 = pneg %p59
        $region14: #{tpu_custom_call.1} parent=11 // pred_check_branch
          %102 = sbr.rel (%p100) target = $region16
        $region15: #{tpu_custom_call.1} parent=11 // pred_region
          %s104 = ssub.s32 4608, 4608
          %105 = vsyncadd [#allocation3], %s104
          %s106 = sshll.u32 [#allocation2], 4
          %s107 = int_to_ptr.vmem [resolvable:$true] %s106
          %112 = dma.hbm_to_vmem [thread:$0]  %s1, 4608, %s107, [#allocation3], 576, 576, 36
        $region16: #{tpu_custom_call.1} parent=11 // pred_fallthru
          _
      $region12: #{tpu_custom_call.1} parent=5 // pred_fallthru
        _
      %p113 = scmp.lt.s32.totalorder %s12, 2
      // Predicated region
      $region17: #{tpu_custom_call.1} parent=5 // pred_check
        %p114 = pneg %p113
      $region18: #{tpu_custom_call.1} parent=5 // pred_check_branch
        %116 = sbr.rel (%p114) target = $region20
      $region19: #{tpu_custom_call.1} parent=5 // pred_region
        // Predicated region
        $region21: #{tpu_custom_call.1} parent=19 // pred_check
          %p117 = pneg %p32
        $region22: #{tpu_custom_call.1} parent=19 // pred_check_branch
          %119 = sbr.rel (%p117) target = $region24
        $region23: #{tpu_custom_call.1} parent=19 // pred_region
          %s120 = smul.u32 16, %s12
          %p121 = scmp.lt.s32.totalorder %s120, 31
          %s122 = scalar_select %p121, %s120, 31
          %s123 = smul.addr %s122, 4
          %s124 = scalar_lea.vmem %s0, %s123
          %s125 = smul.u32 16, %s12
        $region24: #{tpu_custom_call.1} parent=19 // pred_fallthru
          _
      $region20: #{tpu_custom_call.1} parent=5 // pred_fallthru
        _
      %p126 = scmp.le.s32.totalorder 1, %s12
      %p127 = scmp.lt.s32.totalorder %s12, 3
      %p128 = pnand %p126, %p127
      %p129 = pneg %p128
      // Predicated region
      $region25: #{tpu_custom_call.1} parent=5 // pred_check
        _
      $region26: #{tpu_custom_call.1} parent=5 // pred_check_branch
        %131 = sbr.rel (%p128) target = $region28
      $region27: #{tpu_custom_call.1} parent=5 // pred_region
        %s132 = ssub.s32 %s12, 1
        // Predicated region
        $region29: #{tpu_custom_call.1} parent=27 // pred_check
          %p133 = pneg %p59
        $region30: #{tpu_custom_call.1} parent=27 // pred_check_branch
          %135 = sbr.rel (%p133) target = $region32
        $region31: #{tpu_custom_call.1} parent=27 // pred_region
          %136 = dma.done [#allocation3], 4608
        $region32: #{tpu_custom_call.1} parent=27 // pred_fallthru
          _
        %s137 = smul.u32 16, %s17
        %p138 = scmp.lt.s32.totalorder %s137, 31
        %s139 = scalar_select %p138, %s137, 31
        %s140 = smul.addr %s139, 4
        %s141 = scalar_lea.vmem %s0, %s140
        %p142 = pneg %p38
        %p143 = pneg %p35
        %p144 = pneg %p59
        %p145 = pneg %p56
        %p146 = pneg %p85
        %p147 = pneg %p82
        %s148 = sand.u32 %s72, 1
        %s149 = scalar_lea.sflag [#allocation4], %s148
        %s150 = sand.u32 %s72, 1
        %s151 = smul.addr %s150, 192
        %s152 = scalar_lea.vmem [#allocation5], %s151
        %s153 = smul.u32 16, %s17
        %p154 = scmp.lt.s32.totalorder %s153, 31
        %s155 = scalar_select %p154, %s153, 31
        %s156 = smul.addr %s155, 4
        %s157 = scalar_lea.vmem %s0, %s156
        %s158 = smul.u32 16, %s17
        %s159 = smul.u32 16, %s17
        %v161 = vld [vmem:[%s157] sm:$0xf]
        %v162 = vld [vmem:[%s157 + $0x4] sm:$0xf]
        %v163 = vld [vmem:[%s157 + $0x8] sm:$0xf]
        %v164 = vld [vmem:[%s157 + $0xc] sm:$0xf]
        %v165 = vld [vmem:[%s157 + $0x10] sm:$0xf]
        %v166 = vld [vmem:[%s157 + $0x14] sm:$0xf]
        %v167 = vld [vmem:[%s157 + $0x18] sm:$0xf]
        %v168 = vld [vmem:[%s157 + $0x1c] sm:$0xf]
        %v169 = vld [vmem:[%s157 + $0x20] sm:$0xf]
        %v170 = vld [vmem:[%s157 + $0x24] sm:$0xf]
        %v171 = vld [vmem:[%s157 + $0x28] sm:$0xf]
        %v172 = vld [vmem:[%s157 + $0x2c] sm:$0xf]
        %v173 = vld [vmem:[%s157 + $0x30] sm:$0xf]
        %v174 = vld [vmem:[%s157 + $0x34] sm:$0xf]
        %v175 = vld [vmem:[%s157 + $0x38] sm:$0xf]
        %v176 = vld [vmem:[%s157 + $0x3c] sm:$0xf]
        %v177 = vld [vmem:[#allocation2] sm:$0xff]
        %v178 = vld [vmem:[#allocation2 + $0x8] sm:$0xff]
        %v179 = vld [vmem:[#allocation2 + $0x10] sm:$0xff]
        %v180 = vld [vmem:[#allocation2 + $0x18] sm:$0xff]
        %v181 = vld [vmem:[#allocation2 + $0x20] sm:$0xf]
        %v182 = vld [vmem:[#allocation2 + $0x24] sm:$0xff]
        %v183 = vld [vmem:[#allocation2 + $0x2c] sm:$0xff]
        %v184 = vld [vmem:[#allocation2 + $0x34] sm:$0xff]
        %v185 = vld [vmem:[#allocation2 + $0x3c] sm:$0xff]
        %v186 = vld [vmem:[#allocation2 + $0x44] sm:$0xf]
        %v187 = vld [vmem:[#allocation2 + $0x48] sm:$0xff]
        %v188 = vld [vmem:[#allocation2 + $0x50] sm:$0xff]
        %v189 = vld [vmem:[#allocation2 + $0x58] sm:$0xff]
        %v190 = vld [vmem:[#allocation2 + $0x60] sm:$0xff]
        %v191 = vld [vmem:[#allocation2 + $0x68] sm:$0xf]
        %v192 = vld [vmem:[#allocation2 + $0x6c] sm:$0xff]
        %v193 = vld [vmem:[#allocation2 + $0x74] sm:$0xff]
        %v194 = vld [vmem:[#allocation2 + $0x7c] sm:$0xff]
        %v195 = vld [vmem:[#allocation2 + $0x84] sm:$0xff]
        %v196 = vld [vmem:[#allocation2 + $0x8c] sm:$0xf]
        %v197 = vld [vmem:[#allocation2 + $0x90] sm:$0xff]
        %v198 = vld [vmem:[#allocation2 + $0x98] sm:$0xff]
        %v199 = vld [vmem:[#allocation2 + $0xa0] sm:$0xff]
        %v200 = vld [vmem:[#allocation2 + $0xa8] sm:$0xff]
        %v201 = vld [vmem:[#allocation2 + $0xb0] sm:$0xf]
        %v202 = vld [vmem:[#allocation2 + $0xb4] sm:$0xff]
        %v203 = vld [vmem:[#allocation2 + $0xbc] sm:$0xff]
        %v204 = vld [vmem:[#allocation2 + $0xc4] sm:$0xff]
        %v205 = vld [vmem:[#allocation2 + $0xcc] sm:$0xff]
        %v206 = vld [vmem:[#allocation2 + $0xd4] sm:$0xf]
        %v207 = vld [vmem:[#allocation2 + $0xd8] sm:$0xff]
        %v208 = vld [vmem:[#allocation2 + $0xe0] sm:$0xff]
        %v209 = vld [vmem:[#allocation2 + $0xe8] sm:$0xff]
        %v210 = vld [vmem:[#allocation2 + $0xf0] sm:$0xff]
        %v211 = vld [vmem:[#allocation2 + $0xf8] sm:$0xf]
        %v212 = vld [vmem:[#allocation2 + $0xfc] sm:$0xff]
        %v213 = vld [vmem:[#allocation2 + $0x104] sm:$0xff]
        %v214 = vld [vmem:[#allocation2 + $0x10c] sm:$0xff]
        %v215 = vld [vmem:[#allocation2 + $0x114] sm:$0xff]
        %v216 = vld [vmem:[#allocation2 + $0x11c] sm:$0xf]
        %v233 = vunpack.c.l.b16 %v161
        %v234 = vunpack.c.l.b16 %v162
        %v235 = vunpack.c.l.b16 %v163
        %v236 = vunpack.c.l.b16 %v164
        %v237 = vunpack.c.l.b16 %v165
        %v238 = vunpack.c.l.b16 %v166
        %v239 = vunpack.c.l.b16 %v167
        %v240 = vunpack.c.l.b16 %v168
        %v241 = vunpack.c.l.b16 %v169
        %v242 = vunpack.c.l.b16 %v170
        %v243 = vunpack.c.l.b16 %v171
        %v244 = vunpack.c.l.b16 %v172
        %v245 = vunpack.c.l.b16 %v173
        %v246 = vunpack.c.l.b16 %v174
        %v247 = vunpack.c.l.b16 %v175
        %v248 = vunpack.c.l.b16 %v176
        %v249 = vpack.c.b16 %v234, %v233
        %v250 = vpack.c.b16 %v236, %v235
        %v251 = vpack.c.b16 %v238, %v237
        %v252 = vpack.c.b16 %v240, %v239
        %v253 = vpack.c.b16 %v242, %v241
        %v254 = vpack.c.b16 %v244, %v243
        %v255 = vpack.c.b16 %v246, %v245
        %v256 = vpack.c.b16 %v248, %v247
        %v297 = vunpack.c.l.b16 %v177
        %v298 = vunpack.c.h.b16 %v177
        %v299 = vunpack.c.l.b16 %v178
        %v300 = vunpack.c.h.b16 %v178
        %v301 = vunpack.c.l.b16 %v179
        %v302 = vunpack.c.h.b16 %v179
        %v303 = vunpack.c.l.b16 %v180
        %v304 = vunpack.c.h.b16 %v180
        %v305 = vunpack.c.l.b16 %v181
        %v306 = vunpack.c.l.b16 %v182
        %v307 = vunpack.c.h.b16 %v182
        %v308 = vunpack.c.l.b16 %v183
        %v309 = vunpack.c.h.b16 %v183
        %v310 = vunpack.c.l.b16 %v184
        %v311 = vunpack.c.h.b16 %v184
        %v312 = vunpack.c.l.b16 %v185
        %v313 = vunpack.c.h.b16 %v185
        %v314 = vunpack.c.l.b16 %v186
        %v315 = vunpack.c.l.b16 %v187
        %v316 = vunpack.c.h.b16 %v187
        %v317 = vunpack.c.l.b16 %v188
        %v318 = vunpack.c.h.b16 %v188
        %v319 = vunpack.c.l.b16 %v189
        %v320 = vunpack.c.h.b16 %v189
        %v321 = vunpack.c.l.b16 %v190
        %v322 = vunpack.c.h.b16 %v190
        %v323 = vunpack.c.l.b16 %v191
        %v324 = vunpack.c.l.b16 %v192
        %v325 = vunpack.c.h.b16 %v192
        %v326 = vunpack.c.l.b16 %v193
        %v327 = vunpack.c.h.b16 %v193
        %v328 = vunpack.c.l.b16 %v194
        %v329 = vunpack.c.h.b16 %v194
        %v330 = vunpack.c.l.b16 %v195
        %v331 = vunpack.c.h.b16 %v195
        %v332 = vunpack.c.l.b16 %v196
        %v333 = vunpack.c.l.b16 %v197
        %v334 = vunpack.c.h.b16 %v197
        %v335 = vunpack.c.l.b16 %v198
        %v336 = vunpack.c.h.b16 %v198
        %v337 = vunpack.c.l.b16 %v199
        %v338 = vunpack.c.h.b16 %v199
        %v339 = vunpack.c.l.b16 %v200
        %v340 = vunpack.c.h.b16 %v200
        %v341 = vunpack.c.l.b16 %v201
        %v342 = vunpack.c.l.b16 %v202
        %v343 = vunpack.c.h.b16 %v202
        %v344 = vunpack.c.l.b16 %v203
        %v345 = vunpack.c.h.b16 %v203
        %v346 = vunpack.c.l.b16 %v204
        %v347 = vunpack.c.h.b16 %v204
        %v348 = vunpack.c.l.b16 %v205
        %v349 = vunpack.c.h.b16 %v205
        %v350 = vunpack.c.l.b16 %v206
        %v351 = vunpack.c.l.b16 %v207
        %v352 = vunpack.c.h.b16 %v207
        %v353 = vunpack.c.l.b16 %v208
        %v354 = vunpack.c.h.b16 %v208
        %v355 = vunpack.c.l.b16 %v209
        %v356 = vunpack.c.h.b16 %v209
        %v357 = vunpack.c.l.b16 %v210
        %v358 = vunpack.c.h.b16 %v210
        %v359 = vunpack.c.l.b16 %v211
        %v360 = vunpack.c.l.b16 %v212
        %v361 = vunpack.c.h.b16 %v212
        %v362 = vunpack.c.l.b16 %v213
        %v363 = vunpack.c.h.b16 %v213
        %v364 = vunpack.c.l.b16 %v214
        %v365 = vunpack.c.h.b16 %v214
        %v366 = vunpack.c.l.b16 %v215
        %v367 = vunpack.c.h.b16 %v215
        %v368 = vunpack.c.l.b16 %v216
        %v369 = vpack.c.b16 %v306, %v297
        %v370 = vpack.c.b16 %v307, %v298
        %v371 = vpack.c.b16 %v308, %v299
        %v372 = vpack.c.b16 %v309, %v300
        %v373 = vpack.c.b16 %v310, %v301
        %v374 = vpack.c.b16 %v311, %v302
        %v375 = vpack.c.b16 %v312, %v303
        %v376 = vpack.c.b16 %v313, %v304
        %v377 = vpack.c.b16 %v314, %v305
        %v378 = vpack.c.b16 %v324, %v315
        %v379 = vpack.c.b16 %v325, %v316
        %v380 = vpack.c.b16 %v326, %v317
        %v381 = vpack.c.b16 %v327, %v318
        %v382 = vpack.c.b16 %v328, %v319
        %v383 = vpack.c.b16 %v329, %v320
        %v384 = vpack.c.b16 %v330, %v321
        %v385 = vpack.c.b16 %v331, %v322
        %v386 = vpack.c.b16 %v332, %v323
        %v387 = vpack.c.b16 %v342, %v333
        %v388 = vpack.c.b16 %v343, %v334
        %v389 = vpack.c.b16 %v344, %v335
        %v390 = vpack.c.b16 %v345, %v336
        %v391 = vpack.c.b16 %v346, %v337
        %v392 = vpack.c.b16 %v347, %v338
        %v393 = vpack.c.b16 %v348, %v339
        %v394 = vpack.c.b16 %v349, %v340
        %v395 = vpack.c.b16 %v350, %v341
        %v396 = vpack.c.b16 %v360, %v351
        %v397 = vpack.c.b16 %v361, %v352
        %v398 = vpack.c.b16 %v362, %v353
        %v399 = vpack.c.b16 %v363, %v354
        %v400 = vpack.c.b16 %v364, %v355
        %v401 = vpack.c.b16 %v365, %v356
        %v402 = vpack.c.b16 %v366, %v357
        %v403 = vpack.c.b16 %v367, %v358
        %v404 = vpack.c.b16 %v368, %v359
        %vm441 = vcmask 523264
        %v443 = vsel %vm441, %v249, 0
        %v446 = vsel %vm441, %v250, 0
        %v449 = vsel %vm441, %v251, 0
        %v452 = vsel %vm441, %v252, 0
        %v455 = vsel %vm441, %v253, 0
        %v458 = vsel %vm441, %v254, 0
        %v461 = vsel %vm441, %v255, 0
        %v464 = vsel %vm441, %v256, 0
        %466 = vmatprep.subr.bf16.mxu0 %v370
        %467 = vmatpush1.bf16.msra.mxu0 %v369
        %468 = vmatprep.subr.bf16.mxu0 %v379
        %469 = vmatpush1.bf16.msra.mxu0 %v378
        %470 = vmatprep.subr.bf16.mxu0 %v388
        %471 = vmatpush1.bf16.msra.mxu0 %v387
        %472 = vmatprep.subr.bf16.mxu0 %v397
        %473 = vmatpush1.bf16.msra.mxu0 %v396
        %474 = vmatprep.subr.bf16.mxu0 0
        %475 = vmatpush1.bf16.msra.mxu0 0
        %476 = vmatprep.subr.bf16.mxu0 0
        %477 = vmatpush1.bf16.msra.mxu0 0
        %478 = vmatprep.subr.bf16.mxu0 0
        %479 = vmatpush1.bf16.msra.mxu0 0
        %480 = vmatprep.subr.bf16.mxu0 0
        %481 = vmatpush1.bf16.msra.mxu0 0
        %482 = vmatprep.subr.bf16.mxu0 0
        %483 = vmatpush1.bf16.msra.mxu0 0
        %484 = vmatprep.subr.bf16.mxu0 0
        %485 = vmatpush1.bf16.msra.mxu0 0
        %486 = vmatprep.subr.bf16.mxu0 0
        %487 = vmatpush1.bf16.msra.mxu0 0
        %488 = vmatprep.subr.bf16.mxu0 0
        %489 = vmatpush1.bf16.msra.mxu0 0
        %490 = vmatprep.subr.bf16.mxu0 0
        %491 = vmatpush1.bf16.msra.mxu0 0
        %492 = vmatprep.subr.bf16.mxu0 0
        %493 = vmatpush1.bf16.msra.mxu0 0
        %494 = vmatprep.subr.bf16.mxu0 0
        %495 = vmatpush1.bf16.msra.mxu0 0
        %496 = vmatprep.subr.bf16.mxu0 0
        %497 = vmatpush1.bf16.msra.mxu0 0
        %498 = vmatprep.mubr.bf16.mxu0 0
        %499 = vmatmul.mubr.bf16.gmra.mrb[0].mxu0 %v443
        %v500 = vpop.f32.mrb[0].mxu0
        %v501 = vadd.f32 0.0, %v500
        %v502 = vpop.f32.mrb[0].mxu0
        %v503 = vadd.f32 0.0, %v502
        %v504 = vpop.f32.mrb[0].mxu0
        %v505 = vadd.f32 0.0, %v504
        %v506 = vpop.f32.mrb[0].mxu0
        %v507 = vadd.f32 0.0, %v506
        %508 = vmatprep.mubr.bf16.mxu0 0
        %509 = vmatmul.mubr.bf16.gmra.mrb[0].mxu0 %v446
        %v510 = vpop.f32.mrb[0].mxu0
        %v511 = vadd.f32 0.0, %v510
        %v512 = vpop.f32.mrb[0].mxu0
        %v513 = vadd.f32 0.0, %v512
        %v514 = vpop.f32.mrb[0].mxu0
        %v515 = vadd.f32 0.0, %v514
        %v516 = vpop.f32.mrb[0].mxu0
        %v517 = vadd.f32 0.0, %v516
        %518 = vmatprep.mubr.bf16.mxu0 0
        %519 = vmatmul.mubr.bf16.gmra.mrb[0].mxu0 %v449
        %v520 = vpop.f32.mrb[0].mxu0
        %v521 = vadd.f32 0.0, %v520
        %v522 = vpop.f32.mrb[0].mxu0
        %v523 = vadd.f32 0.0, %v522
        %v524 = vpop.f32.mrb[0].mxu0
        %v525 = vadd.f32 0.0, %v524
        %v526 = vpop.f32.mrb[0].mxu0
        %v527 = vadd.f32 0.0, %v526
        %528 = vmatprep.mubr.bf16.mxu0 0
        %529 = vmatmul.mubr.bf16.gmra.mrb[0].mxu0 %v452
        %v530 = vpop.f32.mrb[0].mxu0
        %v531 = vadd.f32 0.0, %v530
        %v532 = vpop.f32.mrb[0].mxu0
        %v533 = vadd.f32 0.0, %v532
        %v534 = vpop.f32.mrb[0].mxu0
        %v535 = vadd.f32 0.0, %v534
        %v536 = vpop.f32.mrb[0].mxu0
        %v537 = vadd.f32 0.0, %v536
        %538 = vmatprep.mubr.bf16.mxu0 0
        %539 = vmatmul.mubr.bf16.gmra.mrb[0].mxu0 %v455
        %v540 = vpop.f32.mrb[0].mxu0
        %v541 = vadd.f32 0.0, %v540
        %v542 = vpop.f32.mrb[0].mxu0
        %v543 = vadd.f32 0.0, %v542
        %v544 = vpop.f32.mrb[0].mxu0
        %v545 = vadd.f32 0.0, %v544
        %v546 = vpop.f32.mrb[0].mxu0
        %v547 = vadd.f32 0.0, %v546
        %548 = vmatprep.mubr.bf16.mxu0 0
        %549 = vmatmul.mubr.bf16.gmra.mrb[0].mxu0 %v458
        %v550 = vpop.f32.mrb[0].mxu0
        %v551 = vadd.f32 0.0, %v550
        %v552 = vpop.f32.mrb[0].mxu0
        %v553 = vadd.f32 0.0, %v552
        %v554 = vpop.f32.mrb[0].mxu0
        %v555 = vadd.f32 0.0, %v554
        %v556 = vpop.f32.mrb[0].mxu0
        %v557 = vadd.f32 0.0, %v556
        %558 = vmatprep.mubr.bf16.mxu0 0
        %559 = vmatmul.mubr.bf16.gmra.mrb[0].mxu0 %v461
        %v560 = vpop.f32.mrb[0].mxu0
        %v561 = vadd.f32 0.0, %v560
        %v562 = vpop.f32.mrb[0].mxu0
        %v563 = vadd.f32 0.0, %v562
        %v564 = vpop.f32.mrb[0].mxu0
        %v565 = vadd.f32 0.0, %v564
        %v566 = vpop.f32.mrb[0].mxu0
        %v567 = vadd.f32 0.0, %v566
        %568 = vmatprep.mubr.bf16.mxu0 0
        %569 = vmatmul.mubr.bf16.gmra.mrb[0].mxu0 %v464
        %v570 = vpop.f32.mrb[0].mxu0
        %v571 = vadd.f32 0.0, %v570
        %v572 = vpop.f32.mrb[0].mxu0
        %v573 = vadd.f32 0.0, %v572
        %v574 = vpop.f32.mrb[0].mxu0
        %v575 = vadd.f32 0.0, %v574
        %v576 = vpop.f32.mrb[0].mxu0
        %v577 = vadd.f32 0.0, %v576
        %578 = vdwg.mxu0
        %579 = vmatprep.subr.bf16.mxu0 %v372
        %580 = vmatpush1.bf16.msra.mxu0 %v371
        %581 = vmatprep.subr.bf16.mxu0 %v381
        %582 = vmatpush1.bf16.msra.mxu0 %v380
        %583 = vmatprep.subr.bf16.mxu0 %v390
        %584 = vmatpush1.bf16.msra.mxu0 %v389
        %585 = vmatprep.subr.bf16.mxu0 %v399
        %586 = vmatpush1.bf16.msra.mxu0 %v398
        %587 = vmatprep.subr.bf16.mxu0 0
        %588 = vmatpush1.bf16.msra.mxu0 0
        %589 = vmatprep.subr.bf16.mxu0 0
        %590 = vmatpush1.bf16.msra.mxu0 0
        %591 = vmatprep.subr.bf16.mxu0 0
        %592 = vmatpush1.bf16.msra.mxu0 0
        %593 = vmatprep.subr.bf16.mxu0 0
        %594 = vmatpush1.bf16.msra.mxu0 0
        %595 = vmatprep.subr.bf16.mxu0 0
        %596 = vmatpush1.bf16.msra.mxu0 0
        %597 = vmatprep.subr.bf16.mxu0 0
        %598 = vmatpush1.bf16.msra.mxu0 0
        %599 = vmatprep.subr.bf16.mxu0 0
        %600 = vmatpush1.bf16.msra.mxu0 0
        %601 = vmatprep.subr.bf16.mxu0 0
        %602 = vmatpush1.bf16.msra.mxu0 0
        %603 = vmatprep.subr.bf16.mxu0 0
        %604 = vmatpush1.bf16.msra.mxu0 0
        %605 = vmatprep.subr.bf16.mxu0 0
        %606 = vmatpush1.bf16.msra.mxu0 0
        %607 = vmatprep.subr.bf16.mxu0 0
        %608 = vmatpush1.bf16.msra.mxu0 0
        %609 = vmatprep.subr.bf16.mxu0 0
        %610 = vmatpush1.bf16.msra.mxu0 0
        %611 = vmatprep.mubr.bf16.mxu0 0
        %612 = vmatmul.mubr.bf16.gmra.mrb[0].mxu0 %v443
        %v613 = vpop.f32.mrb[0].mxu0
        %v614 = vadd.f32 0.0, %v613
        %v615 = vpop.f32.mrb[0].mxu0
        %v616 = vadd.f32 0.0, %v615
        %v617 = vpop.f32.mrb[0].mxu0
        %v618 = vadd.f32 0.0, %v617
        %v619 = vpop.f32.mrb[0].mxu0
        %v620 = vadd.f32 0.0, %v619
        %621 = vmatprep.mubr.bf16.mxu0 0
        %622 = vmatmul.mubr.bf16.gmra.mrb[0].mxu0 %v446
        %v623 = vpop.f32.mrb[0].mxu0
        %v624 = vadd.f32 0.0, %v623
        %v625 = vpop.f32.mrb[0].mxu0
        %v626 = vadd.f32 0.0, %v625
        %v627 = vpop.f32.mrb[0].mxu0
        %v628 = vadd.f32 0.0, %v627
        %v629 = vpop.f32.mrb[0].mxu0
        %v630 = vadd.f32 0.0, %v629
        %631 = vmatprep.mubr.bf16.mxu0 0
        %632 = vmatmul.mubr.bf16.gmra.mrb[0].mxu0 %v449
        %v633 = vpop.f32.mrb[0].mxu0
        %v634 = vadd.f32 0.0, %v633
        %v635 = vpop.f32.mrb[0].mxu0
        %v636 = vadd.f32 0.0, %v635
        %v637 = vpop.f32.mrb[0].mxu0
        %v638 = vadd.f32 0.0, %v637
        %v639 = vpop.f32.mrb[0].mxu0
        %v640 = vadd.f32 0.0, %v639
        %641 = vmatprep.mubr.bf16.mxu0 0
        %642 = vmatmul.mubr.bf16.gmra.mrb[0].mxu0 %v452
        %v643 = vpop.f32.mrb[0].mxu0
        %v644 = vadd.f32 0.0, %v643
        %v645 = vpop.f32.mrb[0].mxu0
        %v646 = vadd.f32 0.0, %v645
        %v647 = vpop.f32.mrb[0].mxu0
        %v648 = vadd.f32 0.0, %v647
        %v649 = vpop.f32.mrb[0].mxu0
        %v650 = vadd.f32 0.0, %v649
        %651 = vmatprep.mubr.bf16.mxu0 0
        %652 = vmatmul.mubr.bf16.gmra.mrb[0].mxu0 %v455
        %v653 = vpop.f32.mrb[0].mxu0
        %v654 = vadd.f32 0.0, %v653
        %v655 = vpop.f32.mrb[0].mxu0
        %v656 = vadd.f32 0.0, %v655
        %v657 = vpop.f32.mrb[0].mxu0
        %v658 = vadd.f32 0.0, %v657
        %v659 = vpop.f32.mrb[0].mxu0
        %v660 = vadd.f32 0.0, %v659
        %661 = vmatprep.mubr.bf16.mxu0 0
        %662 = vmatmul.mubr.bf16.gmra.mrb[0].mxu0 %v458
        %v663 = vpop.f32.mrb[0].mxu0
        %v664 = vadd.f32 0.0, %v663
        %v665 = vpop.f32.mrb[0].mxu0
        %v666 = vadd.f32 0.0, %v665
        %v667 = vpop.f32.mrb[0].mxu0
        %v668 = vadd.f32 0.0, %v667
        %v669 = vpop.f32.mrb[0].mxu0
        %v670 = vadd.f32 0.0, %v669
        %671 = vmatprep.mubr.bf16.mxu0 0
        %672 = vmatmul.mubr.bf16.gmra.mrb[0].mxu0 %v461
        %v673 = vpop.f32.mrb[0].mxu0
        %v674 = vadd.f32 0.0, %v673
        %v675 = vpop.f32.mrb[0].mxu0
        %v676 = vadd.f32 0.0, %v675
        %v677 = vpop.f32.mrb[0].mxu0
        %v678 = vadd.f32 0.0, %v677
        %v679 = vpop.f32.mrb[0].mxu0
        %v680 = vadd.f32 0.0, %v679
        %681 = vmatprep.mubr.bf16.mxu0 0
        %682 = vmatmul.mubr.bf16.gmra.mrb[0].mxu0 %v464
        %v683 = vpop.f32.mrb[0].mxu0
        %v684 = vadd.f32 0.0, %v683
        %v685 = vpop.f32.mrb[0].mxu0
        %v686 = vadd.f32 0.0, %v685
        %v687 = vpop.f32.mrb[0].mxu0
        %v688 = vadd.f32 0.0, %v687
        %v689 = vpop.f32.mrb[0].mxu0
        %v690 = vadd.f32 0.0, %v689
        %691 = vdwg.mxu0
        %692 = vmatprep.subr.bf16.mxu0 %v374
        %693 = vmatpush1.bf16.msra.mxu0 %v373
        %694 = vmatprep.subr.bf16.mxu0 %v383
        %695 = vmatpush1.bf16.msra.mxu0 %v382
        %696 = vmatprep.subr.bf16.mxu0 %v392
        %697 = vmatpush1.bf16.msra.mxu0 %v391
        %698 = vmatprep.subr.bf16.mxu0 %v401
        %699 = vmatpush1.bf16.msra.mxu0 %v400
        %700 = vmatprep.subr.bf16.mxu0 0
        %701 = vmatpush1.bf16.msra.mxu0 0
        %702 = vmatprep.subr.bf16.mxu0 0
        %703 = vmatpush1.bf16.msra.mxu0 0
        %704 = vmatprep.subr.bf16.mxu0 0
        %705 = vmatpush1.bf16.msra.mxu0 0
        %706 = vmatprep.subr.bf16.mxu0 0
        %707 = vmatpush1.bf16.msra.mxu0 0
        %708 = vmatprep.subr.bf16.mxu0 0
        %709 = vmatpush1.bf16.msra.mxu0 0
        %710 = vmatprep.subr.bf16.mxu0 0
        %711 = vmatpush1.bf16.msra.mxu0 0
        %712 = vmatprep.subr.bf16.mxu0 0
        %713 = vmatpush1.bf16.msra.mxu0 0
        %714 = vmatprep.subr.bf16.mxu0 0
        %715 = vmatpush1.bf16.msra.mxu0 0
        %716 = vmatprep.subr.bf16.mxu0 0
        %717 = vmatpush1.bf16.msra.mxu0 0
        %718 = vmatprep.subr.bf16.mxu0 0
        %719 = vmatpush1.bf16.msra.mxu0 0
        %720 = vmatprep.subr.bf16.mxu0 0
        %721 = vmatpush1.bf16.msra.mxu0 0
        %722 = vmatprep.subr.bf16.mxu0 0
        %723 = vmatpush1.bf16.msra.mxu0 0
        %724 = vmatprep.mubr.bf16.mxu0 0
        %725 = vmatmul.mubr.bf16.gmra.mrb[0].mxu0 %v443
        %v726 = vpop.f32.mrb[0].mxu0
        %v727 = vadd.f32 0.0, %v726
        %v728 = vpop.f32.mrb[0].mxu0
        %v729 = vadd.f32 0.0, %v728
        %v730 = vpop.f32.mrb[0].mxu0
        %v731 = vadd.f32 0.0, %v730
        %v732 = vpop.f32.mrb[0].mxu0
        %v733 = vadd.f32 0.0, %v732
        %734 = vmatprep.mubr.bf16.mxu0 0
        %735 = vmatmul.mubr.bf16.gmra.mrb[0].mxu0 %v446
        %v736 = vpop.f32.mrb[0].mxu0
        %v737 = vadd.f32 0.0, %v736
        %v738 = vpop.f32.mrb[0].mxu0
        %v739 = vadd.f32 0.0, %v738
        %v740 = vpop.f32.mrb[0].mxu0
        %v741 = vadd.f32 0.0, %v740
        %v742 = vpop.f32.mrb[0].mxu0
        %v743 = vadd.f32 0.0, %v742
        %744 = vmatprep.mubr.bf16.mxu0 0
        %745 = vmatmul.mubr.bf16.gmra.mrb[0].mxu0 %v449
        %v746 = vpop.f32.mrb[0].mxu0
        %v747 = vadd.f32 0.0, %v746
        %v748 = vpop.f32.mrb[0].mxu0
        %v749 = vadd.f32 0.0, %v748
        %v750 = vpop.f32.mrb[0].mxu0
        %v751 = vadd.f32 0.0, %v750
        %v752 = vpop.f32.mrb[0].mxu0
        %v753 = vadd.f32 0.0, %v752
        %754 = vmatprep.mubr.bf16.mxu0 0
        %755 = vmatmul.mubr.bf16.gmra.mrb[0].mxu0 %v452
        %v756 = vpop.f32.mrb[0].mxu0
        %v757 = vadd.f32 0.0, %v756
        %v758 = vpop.f32.mrb[0].mxu0
        %v759 = vadd.f32 0.0, %v758
        %v760 = vpop.f32.mrb[0].mxu0
        %v761 = vadd.f32 0.0, %v760
        %v762 = vpop.f32.mrb[0].mxu0
        %v763 = vadd.f32 0.0, %v762
        %764 = vmatprep.mubr.bf16.mxu0 0
        %765 = vmatmul.mubr.bf16.gmra.mrb[0].mxu0 %v455
        %v766 = vpop.f32.mrb[0].mxu0
        %v767 = vadd.f32 0.0, %v766
        %v768 = vpop.f32.mrb[0].mxu0
        %v769 = vadd.f32 0.0, %v768
        %v770 = vpop.f32.mrb[0].mxu0
        %v771 = vadd.f32 0.0, %v770
        %v772 = vpop.f32.mrb[0].mxu0
        %v773 = vadd.f32 0.0, %v772
        %774 = vmatprep.mubr.bf16.mxu0 0
        %775 = vmatmul.mubr.bf16.gmra.mrb[0].mxu0 %v458
        %v776 = vpop.f32.mrb[0].mxu0
        %v777 = vadd.f32 0.0, %v776
        %v778 = vpop.f32.mrb[0].mxu0
        %v779 = vadd.f32 0.0, %v778
        %v780 = vpop.f32.mrb[0].mxu0
        %v781 = vadd.f32 0.0, %v780
        %v782 = vpop.f32.mrb[0].mxu0
        %v783 = vadd.f32 0.0, %v782
        %784 = vmatprep.mubr.bf16.mxu0 0
        %785 = vmatmul.mubr.bf16.gmra.mrb[0].mxu0 %v461
        %v786 = vpop.f32.mrb[0].mxu0
        %v787 = vadd.f32 0.0, %v786
        %v788 = vpop.f32.mrb[0].mxu0
        %v789 = vadd.f32 0.0, %v788
        %v790 = vpop.f32.mrb[0].mxu0
        %v791 = vadd.f32 0.0, %v790
        %v792 = vpop.f32.mrb[0].mxu0
        %v793 = vadd.f32 0.0, %v792
        %794 = vmatprep.mubr.bf16.mxu0 0
        %795 = vmatmul.mubr.bf16.gmra.mrb[0].mxu0 %v464
        %v796 = vpop.f32.mrb[0].mxu0
        %v797 = vadd.f32 0.0, %v796
        %v798 = vpop.f32.mrb[0].mxu0
        %v799 = vadd.f32 0.0, %v798
        %v800 = vpop.f32.mrb[0].mxu0
        %v801 = vadd.f32 0.0, %v800
        %v802 = vpop.f32.mrb[0].mxu0
        %v803 = vadd.f32 0.0, %v802
        %804 = vdwg.mxu0
        %805 = vmatprep.subr.bf16.mxu0 %v376
        %806 = vmatpush1.bf16.msra.mxu0 %v375
        %807 = vmatprep.subr.bf16.mxu0 %v385
        %808 = vmatpush1.bf16.msra.mxu0 %v384
        %809 = vmatprep.subr.bf16.mxu0 %v394
        %810 = vmatpush1.bf16.msra.mxu0 %v393
        %811 = vmatprep.subr.bf16.mxu0 %v403
        %812 = vmatpush1.bf16.msra.mxu0 %v402
        %813 = vmatprep.subr.bf16.mxu0 0
        %814 = vmatpush1.bf16.msra.mxu0 0
        %815 = vmatprep.subr.bf16.mxu0 0
        %816 = vmatpush1.bf16.msra.mxu0 0
        %817 = vmatprep.subr.bf16.mxu0 0
        %818 = vmatpush1.bf16.msra.mxu0 0
        %819 = vmatprep.subr.bf16.mxu0 0
        %820 = vmatpush1.bf16.msra.mxu0 0
        %821 = vmatprep.subr.bf16.mxu0 0
        %822 = vmatpush1.bf16.msra.mxu0 0
        %823 = vmatprep.subr.bf16.mxu0 0
        %824 = vmatpush1.bf16.msra.mxu0 0
        %825 = vmatprep.subr.bf16.mxu0 0
        %826 = vmatpush1.bf16.msra.mxu0 0
        %827 = vmatprep.subr.bf16.mxu0 0
        %828 = vmatpush1.bf16.msra.mxu0 0
        %829 = vmatprep.subr.bf16.mxu0 0
        %830 = vmatpush1.bf16.msra.mxu0 0
        %831 = vmatprep.subr.bf16.mxu0 0
        %832 = vmatpush1.bf16.msra.mxu0 0
        %833 = vmatprep.subr.bf16.mxu0 0
        %834 = vmatpush1.bf16.msra.mxu0 0
        %835 = vmatprep.subr.bf16.mxu0 0
        %836 = vmatpush1.bf16.msra.mxu0 0
        %837 = vmatprep.mubr.bf16.mxu0 0
        %838 = vmatmul.mubr.bf16.gmra.mrb[0].mxu0 %v443
        %v839 = vpop.f32.mrb[0].mxu0
        %v840 = vadd.f32 0.0, %v839
        %v841 = vpop.f32.mrb[0].mxu0
        %v842 = vadd.f32 0.0, %v841
        %v843 = vpop.f32.mrb[0].mxu0
        %v844 = vadd.f32 0.0, %v843
        %v845 = vpop.f32.mrb[0].mxu0
        %v846 = vadd.f32 0.0, %v845
        %847 = vmatprep.mubr.bf16.mxu0 0
        %848 = vmatmul.mubr.bf16.gmra.mrb[0].mxu0 %v446
        %v849 = vpop.f32.mrb[0].mxu0
        %v850 = vadd.f32 0.0, %v849
        %v851 = vpop.f32.mrb[0].mxu0
        %v852 = vadd.f32 0.0, %v851
        %v853 = vpop.f32.mrb[0].mxu0
        %v854 = vadd.f32 0.0, %v853
        %v855 = vpop.f32.mrb[0].mxu0
        %v856 = vadd.f32 0.0, %v855
        %857 = vmatprep.mubr.bf16.mxu0 0
        %858 = vmatmul.mubr.bf16.gmra.mrb[0].mxu0 %v449
        %v859 = vpop.f32.mrb[0].mxu0
        %v860 = vadd.f32 0.0, %v859
        %v861 = vpop.f32.mrb[0].mxu0
        %v862 = vadd.f32 0.0, %v861
        %v863 = vpop.f32.mrb[0].mxu0
        %v864 = vadd.f32 0.0, %v863
        %v865 = vpop.f32.mrb[0].mxu0
        %v866 = vadd.f32 0.0, %v865
        %867 = vmatprep.mubr.bf16.mxu0 0
        %868 = vmatmul.mubr.bf16.gmra.mrb[0].mxu0 %v452
        %v869 = vpop.f32.mrb[0].mxu0
        %v870 = vadd.f32 0.0, %v869
        %v871 = vpop.f32.mrb[0].mxu0
        %v872 = vadd.f32 0.0, %v871
        %v873 = vpop.f32.mrb[0].mxu0
        %v874 = vadd.f32 0.0, %v873
        %v875 = vpop.f32.mrb[0].mxu0
        %v876 = vadd.f32 0.0, %v875
        %877 = vmatprep.mubr.bf16.mxu0 0
        %878 = vmatmul.mubr.bf16.gmra.mrb[0].mxu0 %v455
        %v879 = vpop.f32.mrb[0].mxu0
        %v880 = vadd.f32 0.0, %v879
        %v881 = vpop.f32.mrb[0].mxu0
        %v882 = vadd.f32 0.0, %v881
        %v883 = vpop.f32.mrb[0].mxu0
        %v884 = vadd.f32 0.0, %v883
        %v885 = vpop.f32.mrb[0].mxu0
        %v886 = vadd.f32 0.0, %v885
        %887 = vmatprep.mubr.bf16.mxu0 0
        %888 = vmatmul.mubr.bf16.gmra.mrb[0].mxu0 %v458
        %v889 = vpop.f32.mrb[0].mxu0
        %v890 = vadd.f32 0.0, %v889
        %v891 = vpop.f32.mrb[0].mxu0
        %v892 = vadd.f32 0.0, %v891
        %v893 = vpop.f32.mrb[0].mxu0
        %v894 = vadd.f32 0.0, %v893
        %v895 = vpop.f32.mrb[0].mxu0
        %v896 = vadd.f32 0.0, %v895
        %897 = vmatprep.mubr.bf16.mxu0 0
        %898 = vmatmul.mubr.bf16.gmra.mrb[0].mxu0 %v461
        %v899 = vpop.f32.mrb[0].mxu0
        %v900 = vadd.f32 0.0, %v899
        %v901 = vpop.f32.mrb[0].mxu0
        %v902 = vadd.f32 0.0, %v901
        %v903 = vpop.f32.mrb[0].mxu0
        %v904 = vadd.f32 0.0, %v903
        %v905 = vpop.f32.mrb[0].mxu0
        %v906 = vadd.f32 0.0, %v905
        %907 = vmatprep.mubr.bf16.mxu0 0
        %908 = vmatmul.mubr.bf16.gmra.mrb[0].mxu0 %v464
        %v909 = vpop.f32.mrb[0].mxu0
        %v910 = vadd.f32 0.0, %v909
        %v911 = vpop.f32.mrb[0].mxu0
        %v912 = vadd.f32 0.0, %v911
        %v913 = vpop.f32.mrb[0].mxu0
        %v914 = vadd.f32 0.0, %v913
        %v915 = vpop.f32.mrb[0].mxu0
        %v916 = vadd.f32 0.0, %v915
        %917 = vdwg.mxu0
        %918 = vmatprep.subr.bf16.mxu0 0
        %919 = vmatpush1.bf16.msra.mxu0 %v377
        %920 = vmatprep.subr.bf16.mxu0 0
        %921 = vmatpush1.bf16.msra.mxu0 %v386
        %922 = vmatprep.subr.bf16.mxu0 0
        %923 = vmatpush1.bf16.msra.mxu0 %v395
        %924 = vmatprep.subr.bf16.mxu0 0
        %925 = vmatpush1.bf16.msra.mxu0 %v404
        %926 = vmatprep.subr.bf16.mxu0 0
        %927 = vmatpush1.bf16.msra.mxu0 0
        %928 = vmatprep.subr.bf16.mxu0 0
        %929 = vmatpush1.bf16.msra.mxu0 0
        %930 = vmatprep.subr.bf16.mxu0 0
        %931 = vmatpush1.bf16.msra.mxu0 0
        %932 = vmatprep.subr.bf16.mxu0 0
        %933 = vmatpush1.bf16.msra.mxu0 0
        %934 = vmatprep.subr.bf16.mxu0 0
        %935 = vmatpush1.bf16.msra.mxu0 0
        %936 = vmatprep.subr.bf16.mxu0 0
        %937 = vmatpush1.bf16.msra.mxu0 0
        %938 = vmatprep.subr.bf16.mxu0 0
        %939 = vmatpush1.bf16.msra.mxu0 0
        %940 = vmatprep.subr.bf16.mxu0 0
        %941 = vmatpush1.bf16.msra.mxu0 0
        %942 = vmatprep.subr.bf16.mxu0 0
        %943 = vmatpush1.bf16.msra.mxu0 0
        %944 = vmatprep.subr.bf16.mxu0 0
        %945 = vmatpush1.bf16.msra.mxu0 0
        %946 = vmatprep.subr.bf16.mxu0 0
        %947 = vmatpush1.bf16.msra.mxu0 0
        %948 = vmatprep.subr.bf16.mxu0 0
        %949 = vmatpush1.bf16.msra.mxu0 0
        %950 = vmatprep.mubr.bf16.mxu0 0
        %951 = vmatmul.mubr.bf16.gmra.mrb[0].mxu0 %v443
        %v952 = vpop.f32.mrb[0].mxu0
        %v953 = vadd.f32 0.0, %v952
        %v954 = vpop.f32.mrb[0].mxu0
        %v955 = vpop.f32.mrb[0].mxu0
        %v956 = vadd.f32 0.0, %v955
        %v957 = vpop.f32.mrb[0].mxu0
        %958 = vmatprep.mubr.bf16.mxu0 0
        %959 = vmatmul.mubr.bf16.gmra.mrb[0].mxu0 %v446
        %v960 = vpop.f32.mrb[0].mxu0
        %v961 = vadd.f32 0.0, %v960
        %v962 = vpop.f32.mrb[0].mxu0
        %v963 = vpop.f32.mrb[0].mxu0
        %v964 = vadd.f32 0.0, %v963
        %v965 = vpop.f32.mrb[0].mxu0
        %966 = vmatprep.mubr.bf16.mxu0 0
        %967 = vmatmul.mubr.bf16.gmra.mrb[0].mxu0 %v449
        %v968 = vpop.f32.mrb[0].mxu0
        %v969 = vadd.f32 0.0, %v968
        %v970 = vpop.f32.mrb[0].mxu0
        %v971 = vpop.f32.mrb[0].mxu0
        %v972 = vadd.f32 0.0, %v971
        %v973 = vpop.f32.mrb[0].mxu0
        %974 = vmatprep.mubr.bf16.mxu0 0
        %975 = vmatmul.mubr.bf16.gmra.mrb[0].mxu0 %v452
        %v976 = vpop.f32.mrb[0].mxu0
        %v977 = vadd.f32 0.0, %v976
        %v978 = vpop.f32.mrb[0].mxu0
        %v979 = vpop.f32.mrb[0].mxu0
        %v980 = vadd.f32 0.0, %v979
        %v981 = vpop.f32.mrb[0].mxu0
        %982 = vmatprep.mubr.bf16.mxu0 0
        %983 = vmatmul.mubr.bf16.gmra.mrb[0].mxu0 %v455
        %v984 = vpop.f32.mrb[0].mxu0
        %v985 = vadd.f32 0.0, %v984
        %v986 = vpop.f32.mrb[0].mxu0
        %v987 = vpop.f32.mrb[0].mxu0
        %v988 = vadd.f32 0.0, %v987
        %v989 = vpop.f32.mrb[0].mxu0
        %990 = vmatprep.mubr.bf16.mxu0 0
        %991 = vmatmul.mubr.bf16.gmra.mrb[0].mxu0 %v458
        %v992 = vpop.f32.mrb[0].mxu0
        %v993 = vadd.f32 0.0, %v992
        %v994 = vpop.f32.mrb[0].mxu0
        %v995 = vpop.f32.mrb[0].mxu0
        %v996 = vadd.f32 0.0, %v995
        %v997 = vpop.f32.mrb[0].mxu0
        %998 = vmatprep.mubr.bf16.mxu0 0
        %999 = vmatmul.mubr.bf16.gmra.mrb[0].mxu0 %v461
        %v1000 = vpop.f32.mrb[0].mxu0
        %v1001 = vadd.f32 0.0, %v1000
        %v1002 = vpop.f32.mrb[0].mxu0
        %v1003 = vpop.f32.mrb[0].mxu0
        %v1004 = vadd.f32 0.0, %v1003
        %v1005 = vpop.f32.mrb[0].mxu0
        %1006 = vmatprep.mubr.bf16.mxu0 0
        %1007 = vmatmul.mubr.bf16.gmra.mrb[0].mxu0 %v464
        %v1008 = vpop.f32.mrb[0].mxu0
        %v1009 = vadd.f32 0.0, %v1008
        %v1010 = vpop.f32.mrb[0].mxu0
        %v1011 = vpop.f32.mrb[0].mxu0
        %v1012 = vadd.f32 0.0, %v1011
        %v1013 = vpop.f32.mrb[0].mxu0
        %1014 = vdwg.mxu0
        %v1015 = vmul.f32 %v503, %v501
        %v1016 = vmul.f32 %v507, %v505
        %v1017 = vmul.f32 %v513, %v511
        %v1018 = vmul.f32 %v517, %v515
        %v1019 = vmul.f32 %v523, %v521
        %v1020 = vmul.f32 %v527, %v525
        %v1021 = vmul.f32 %v533, %v531
        %v1022 = vmul.f32 %v537, %v535
        %v1023 = vmul.f32 %v543, %v541
        %v1024 = vmul.f32 %v547, %v545
        %v1025 = vmul.f32 %v553, %v551
        %v1026 = vmul.f32 %v557, %v555
        %v1027 = vmul.f32 %v563, %v561
        %v1028 = vmul.f32 %v567, %v565
        %v1029 = vmul.f32 %v573, %v571
        %v1030 = vmul.f32 %v577, %v575
        %v1031 = vadd.f32 %v1015, %v614
        %v1032 = vadd.f32 %v1016, %v618
        %v1033 = vadd.f32 %v1017, %v624
        %v1034 = vadd.f32 %v1018, %v628
        %v1035 = vadd.f32 %v1019, %v634
        %v1036 = vadd.f32 %v1020, %v638
        %v1037 = vadd.f32 %v1021, %v644
        %v1038 = vadd.f32 %v1022, %v648
        %v1039 = vadd.f32 %v1023, %v654
        %v1040 = vadd.f32 %v1024, %v658
        %v1041 = vadd.f32 %v1025, %v664
        %v1042 = vadd.f32 %v1026, %v668
        %v1043 = vadd.f32 %v1027, %v674
        %v1044 = vadd.f32 %v1028, %v678
        %v1045 = vadd.f32 %v1029, %v684
        %v1046 = vadd.f32 %v1030, %v688
        %v1047 = vmax.f32 %v1031, 0.0
        %v1048 = vmax.f32 %v1032, 0.0
        %v1049 = vmax.f32 %v1033, 0.0
        %v1050 = vmax.f32 %v1034, 0.0
        %v1051 = vmax.f32 %v1035, 0.0
        %v1052 = vmax.f32 %v1036, 0.0
        %v1053 = vmax.f32 %v1037, 0.0
        %v1054 = vmax.f32 %v1038, 0.0
        %v1055 = vmax.f32 %v1039, 0.0
        %v1056 = vmax.f32 %v1040, 0.0
        %v1057 = vmax.f32 %v1041, 0.0
        %v1058 = vmax.f32 %v1042, 0.0
        %v1059 = vmax.f32 %v1043, 0.0
        %v1060 = vmax.f32 %v1044, 0.0
        %v1061 = vmax.f32 %v1045, 0.0
        %v1062 = vmax.f32 %v1046, 0.0
        %v1063 = vpack.c.bf16 %v1048, %v1047
        %v1064 = vpack.c.bf16 %v1050, %v1049
        %v1065 = vpack.c.bf16 %v1052, %v1051
        %v1066 = vpack.c.bf16 %v1054, %v1053
        %v1067 = vpack.c.bf16 %v1056, %v1055
        %v1068 = vpack.c.bf16 %v1058, %v1057
        %v1069 = vpack.c.bf16 %v1060, %v1059
        %v1070 = vpack.c.bf16 %v1062, %v1061
        %v1079 = vunpack.c.l.b16 %v1063
        %v1080 = vunpack.c.h.b16 %v1063
        %v1081 = vunpack.c.l.b16 %v1064
        %v1082 = vunpack.c.h.b16 %v1064
        %v1083 = vunpack.c.l.b16 %v1065
        %v1084 = vunpack.c.h.b16 %v1065
        %v1085 = vunpack.c.l.b16 %v1066
        %v1086 = vunpack.c.h.b16 %v1066
        %v1087 = vunpack.c.l.b16 %v1067
        %v1088 = vunpack.c.h.b16 %v1067
        %v1089 = vunpack.c.l.b16 %v1068
        %v1090 = vunpack.c.h.b16 %v1068
        %v1091 = vunpack.c.l.b16 %v1069
        %v1092 = vunpack.c.h.b16 %v1069
        %v1093 = vunpack.c.l.b16 %v1070
        %v1094 = vunpack.c.h.b16 %v1070
        %v1095 = vpack.c.b16 %v1079, %v1079
        %v1096 = vpack.c.b16 %v1080, %v1080
        %v1097 = vpack.c.b16 %v1081, %v1081
        %v1098 = vpack.c.b16 %v1082, %v1082
        %v1099 = vpack.c.b16 %v1083, %v1083
        %v1100 = vpack.c.b16 %v1084, %v1084
        %v1101 = vpack.c.b16 %v1085, %v1085
        %v1102 = vpack.c.b16 %v1086, %v1086
        %v1103 = vpack.c.b16 %v1087, %v1087
        %v1104 = vpack.c.b16 %v1088, %v1088
        %v1105 = vpack.c.b16 %v1089, %v1089
        %v1106 = vpack.c.b16 %v1090, %v1090
        %v1107 = vpack.c.b16 %v1091, %v1091
        %v1108 = vpack.c.b16 %v1092, %v1092
        %v1109 = vpack.c.b16 %v1093, %v1093
        %v1110 = vpack.c.b16 %v1094, %v1094
        %1127 = vst [vmem:[%s152] sm:$0xf] %v1095
        %1128 = vst [vmem:[%s152 + $0x4] sm:$0xf] %v1096
        %1129 = vst [vmem:[%s152 + $0x8] sm:$0xf] %v1097
        %1130 = vst [vmem:[%s152 + $0xc] sm:$0xf] %v1098
        %1131 = vst [vmem:[%s152 + $0x10] sm:$0xf] %v1099
        %1132 = vst [vmem:[%s152 + $0x14] sm:$0xf] %v1100
        %1133 = vst [vmem:[%s152 + $0x18] sm:$0xf] %v1101
        %1134 = vst [vmem:[%s152 + $0x1c] sm:$0xf] %v1102
        %1135 = vst [vmem:[%s152 + $0x20] sm:$0xf] %v1103
        %1136 = vst [vmem:[%s152 + $0x24] sm:$0xf] %v1104
        %1137 = vst [vmem:[%s152 + $0x28] sm:$0xf] %v1105
        %1138 = vst [vmem:[%s152 + $0x2c] sm:$0xf] %v1106
        %1139 = vst [vmem:[%s152 + $0x30] sm:$0xf] %v1107
        %1140 = vst [vmem:[%s152 + $0x34] sm:$0xf] %v1108
        %1141 = vst [vmem:[%s152 + $0x38] sm:$0xf] %v1109
        %1142 = vst [vmem:[%s152 + $0x3c] sm:$0xf] %v1110
        %v1143 = vmul.f32 %v727, %v616
        %v1144 = vmul.f32 %v731, %v620
        %v1145 = vmul.f32 %v737, %v626
        %v1146 = vmul.f32 %v741, %v630
        %v1147 = vmul.f32 %v747, %v636
        %v1148 = vmul.f32 %v751, %v640
        %v1149 = vmul.f32 %v757, %v646
        %v1150 = vmul.f32 %v761, %v650
        %v1151 = vmul.f32 %v767, %v656
        %v1152 = vmul.f32 %v771, %v660
        %v1153 = vmul.f32 %v777, %v666
        %v1154 = vmul.f32 %v781, %v670
        %v1155 = vmul.f32 %v787, %v676
        %v1156 = vmul.f32 %v791, %v680
        %v1157 = vmul.f32 %v797, %v686
        %v1158 = vmul.f32 %v801, %v690
        %v1159 = vadd.f32 %v1143, %v729
        %v1160 = vadd.f32 %v1144, %v733
        %v1161 = vadd.f32 %v1145, %v739
        %v1162 = vadd.f32 %v1146, %v743
        %v1163 = vadd.f32 %v1147, %v749
        %v1164 = vadd.f32 %v1148, %v753
        %v1165 = vadd.f32 %v1149, %v759
        %v1166 = vadd.f32 %v1150, %v763
        %v1167 = vadd.f32 %v1151, %v769
        %v1168 = vadd.f32 %v1152, %v773
        %v1169 = vadd.f32 %v1153, %v779
        %v1170 = vadd.f32 %v1154, %v783
        %v1171 = vadd.f32 %v1155, %v789
        %v1172 = vadd.f32 %v1156, %v793
        %v1173 = vadd.f32 %v1157, %v799
        %v1174 = vadd.f32 %v1158, %v803
        %v1175 = vmax.f32 %v1159, 0.0
        %v1176 = vmax.f32 %v1160, 0.0
        %v1177 = vmax.f32 %v1161, 0.0
        %v1178 = vmax.f32 %v1162, 0.0
        %v1179 = vmax.f32 %v1163, 0.0
        %v1180 = vmax.f32 %v1164, 0.0
        %v1181 = vmax.f32 %v1165, 0.0
        %v1182 = vmax.f32 %v1166, 0.0
        %v1183 = vmax.f32 %v1167, 0.0
        %v1184 = vmax.f32 %v1168, 0.0
        %v1185 = vmax.f32 %v1169, 0.0
        %v1186 = vmax.f32 %v1170, 0.0
        %v1187 = vmax.f32 %v1171, 0.0
        %v1188 = vmax.f32 %v1172, 0.0
        %v1189 = vmax.f32 %v1173, 0.0
        %v1190 = vmax.f32 %v1174, 0.0
        %v1191 = vpack.c.bf16 %v1176, %v1175
        %v1192 = vpack.c.bf16 %v1178, %v1177
        %v1193 = vpack.c.bf16 %v1180, %v1179
        %v1194 = vpack.c.bf16 %v1182, %v1181
        %v1195 = vpack.c.bf16 %v1184, %v1183
        %v1196 = vpack.c.bf16 %v1186, %v1185
        %v1197 = vpack.c.bf16 %v1188, %v1187
        %v1198 = vpack.c.bf16 %v1190, %v1189
        %v1207 = vunpack.c.l.b16 %v1191
        %v1208 = vunpack.c.h.b16 %v1191
        %v1209 = vunpack.c.l.b16 %v1192
        %v1210 = vunpack.c.h.b16 %v1192
        %v1211 = vunpack.c.l.b16 %v1193
        %v1212 = vunpack.c.h.b16 %v1193
        %v1213 = vunpack.c.l.b16 %v1194
        %v1214 = vunpack.c.h.b16 %v1194
        %v1215 = vunpack.c.l.b16 %v1195
        %v1216 = vunpack.c.h.b16 %v1195
        %v1217 = vunpack.c.l.b16 %v1196
        %v1218 = vunpack.c.h.b16 %v1196
        %v1219 = vunpack.c.l.b16 %v1197
        %v1220 = vunpack.c.h.b16 %v1197
        %v1221 = vunpack.c.l.b16 %v1198
        %v1222 = vunpack.c.h.b16 %v1198
        %v1223 = vpack.c.b16 %v1207, %v1207
        %v1224 = vpack.c.b16 %v1208, %v1208
        %v1225 = vpack.c.b16 %v1209, %v1209
        %v1226 = vpack.c.b16 %v1210, %v1210
        %v1227 = vpack.c.b16 %v1211, %v1211
        %v1228 = vpack.c.b16 %v1212, %v1212
        %v1229 = vpack.c.b16 %v1213, %v1213
        %v1230 = vpack.c.b16 %v1214, %v1214
        %v1231 = vpack.c.b16 %v1215, %v1215
        %v1232 = vpack.c.b16 %v1216, %v1216
        %v1233 = vpack.c.b16 %v1217, %v1217
        %v1234 = vpack.c.b16 %v1218, %v1218
        %v1235 = vpack.c.b16 %v1219, %v1219
        %v1236 = vpack.c.b16 %v1220, %v1220
        %v1237 = vpack.c.b16 %v1221, %v1221
        %v1238 = vpack.c.b16 %v1222, %v1222
        %s1255 = scalar_lea.vmem %s152, 64 [#allocation5]
        %1256 = vst [vmem:[%s1255] sm:$0xf] %v1223
        %1257 = vst [vmem:[%s1255 + $0x4] sm:$0xf] %v1224
        %1258 = vst [vmem:[%s1255 + $0x8] sm:$0xf] %v1225
        %1259 = vst [vmem:[%s1255 + $0xc] sm:$0xf] %v1226
        %1260 = vst [vmem:[%s1255 + $0x10] sm:$0xf] %v1227
        %1261 = vst [vmem:[%s1255 + $0x14] sm:$0xf] %v1228
        %1262 = vst [vmem:[%s1255 + $0x18] sm:$0xf] %v1229
        %1263 = vst [vmem:[%s1255 + $0x1c] sm:$0xf] %v1230
        %1264 = vst [vmem:[%s1255 + $0x20] sm:$0xf] %v1231
        %1265 = vst [vmem:[%s1255 + $0x24] sm:$0xf] %v1232
        %1266 = vst [vmem:[%s1255 + $0x28] sm:$0xf] %v1233
        %1267 = vst [vmem:[%s1255 + $0x2c] sm:$0xf] %v1234
        %1268 = vst [vmem:[%s1255 + $0x30] sm:$0xf] %v1235
        %1269 = vst [vmem:[%s1255 + $0x34] sm:$0xf] %v1236
        %1270 = vst [vmem:[%s1255 + $0x38] sm:$0xf] %v1237
        %1271 = vst [vmem:[%s1255 + $0x3c] sm:$0xf] %v1238
        %v1272 = vmul.f32 %v842, %v840
        %v1273 = vmul.f32 %v846, %v844
        %v1274 = vmul.f32 %v852, %v850
        %v1275 = vmul.f32 %v856, %v854
        %v1276 = vmul.f32 %v862, %v860
        %v1277 = vmul.f32 %v866, %v864
        %v1278 = vmul.f32 %v872, %v870
        %v1279 = vmul.f32 %v876, %v874
        %v1280 = vmul.f32 %v882, %v880
        %v1281 = vmul.f32 %v886, %v884
        %v1282 = vmul.f32 %v892, %v890
        %v1283 = vmul.f32 %v896, %v894
        %v1284 = vmul.f32 %v902, %v900
        %v1285 = vmul.f32 %v906, %v904
        %v1286 = vmul.f32 %v912, %v910
        %v1287 = vmul.f32 %v916, %v914
        %v1288 = vadd.f32 %v1272, %v953
        %v1289 = vadd.f32 %v1273, %v956
        %v1290 = vadd.f32 %v1274, %v961
        %v1291 = vadd.f32 %v1275, %v964
        %v1292 = vadd.f32 %v1276, %v969
        %v1293 = vadd.f32 %v1277, %v972
        %v1294 = vadd.f32 %v1278, %v977
        %v1295 = vadd.f32 %v1279, %v980
        %v1296 = vadd.f32 %v1280, %v985
        %v1297 = vadd.f32 %v1281, %v988
        %v1298 = vadd.f32 %v1282, %v993
        %v1299 = vadd.f32 %v1283, %v996
        %v1300 = vadd.f32 %v1284, %v1001
        %v1301 = vadd.f32 %v1285, %v1004
        %v1302 = vadd.f32 %v1286, %v1009
        %v1303 = vadd.f32 %v1287, %v1012
        %v1304 = vmax.f32 %v1288, 0.0
        %v1305 = vmax.f32 %v1289, 0.0
        %v1306 = vmax.f32 %v1290, 0.0
        %v1307 = vmax.f32 %v1291, 0.0
        %v1308 = vmax.f32 %v1292, 0.0
        %v1309 = vmax.f32 %v1293, 0.0
        %v1310 = vmax.f32 %v1294, 0.0
        %v1311 = vmax.f32 %v1295, 0.0
        %v1312 = vmax.f32 %v1296, 0.0
        %v1313 = vmax.f32 %v1297, 0.0
        %v1314 = vmax.f32 %v1298, 0.0
        %v1315 = vmax.f32 %v1299, 0.0
        %v1316 = vmax.f32 %v1300, 0.0
        %v1317 = vmax.f32 %v1301, 0.0
        %v1318 = vmax.f32 %v1302, 0.0
        %v1319 = vmax.f32 %v1303, 0.0
        %v1320 = vpack.c.bf16 %v1305, %v1304
        %v1321 = vpack.c.bf16 %v1307, %v1306
        %v1322 = vpack.c.bf16 %v1309, %v1308
        %v1323 = vpack.c.bf16 %v1311, %v1310
        %v1324 = vpack.c.bf16 %v1313, %v1312
        %v1325 = vpack.c.bf16 %v1315, %v1314
        %v1326 = vpack.c.bf16 %v1317, %v1316
        %v1327 = vpack.c.bf16 %v1319, %v1318
        %v1336 = vunpack.c.l.b16 %v1320
        %v1337 = vunpack.c.h.b16 %v1320
        %v1338 = vunpack.c.l.b16 %v1321
        %v1339 = vunpack.c.h.b16 %v1321
        %v1340 = vunpack.c.l.b16 %v1322
        %v1341 = vunpack.c.h.b16 %v1322
        %v1342 = vunpack.c.l.b16 %v1323
        %v1343 = vunpack.c.h.b16 %v1323
        %v1344 = vunpack.c.l.b16 %v1324
        %v1345 = vunpack.c.h.b16 %v1324
        %v1346 = vunpack.c.l.b16 %v1325
        %v1347 = vunpack.c.h.b16 %v1325
        %v1348 = vunpack.c.l.b16 %v1326
        %v1349 = vunpack.c.h.b16 %v1326
        %v1350 = vunpack.c.l.b16 %v1327
        %v1351 = vunpack.c.h.b16 %v1327
        %v1352 = vpack.c.b16 %v1336, %v1336
        %v1353 = vpack.c.b16 %v1337, %v1337
        %v1354 = vpack.c.b16 %v1338, %v1338
        %v1355 = vpack.c.b16 %v1339, %v1339
        %v1356 = vpack.c.b16 %v1340, %v1340
        %v1357 = vpack.c.b16 %v1341, %v1341
        %v1358 = vpack.c.b16 %v1342, %v1342
        %v1359 = vpack.c.b16 %v1343, %v1343
        %v1360 = vpack.c.b16 %v1344, %v1344
        %v1361 = vpack.c.b16 %v1345, %v1345
        %v1362 = vpack.c.b16 %v1346, %v1346
        %v1363 = vpack.c.b16 %v1347, %v1347
        %v1364 = vpack.c.b16 %v1348, %v1348
        %v1365 = vpack.c.b16 %v1349, %v1349
        %v1366 = vpack.c.b16 %v1350, %v1350
        %v1367 = vpack.c.b16 %v1351, %v1351
        %s1384 = scalar_lea.vmem %s152, 128 [#allocation5]
        %1385 = vst [vmem:[%s1384] sm:$0xf] %v1352
        %1386 = vst [vmem:[%s1384 + $0x4] sm:$0xf] %v1353
        %1387 = vst [vmem:[%s1384 + $0x8] sm:$0xf] %v1354
        %1388 = vst [vmem:[%s1384 + $0xc] sm:$0xf] %v1355
        %1389 = vst [vmem:[%s1384 + $0x10] sm:$0xf] %v1356
        %1390 = vst [vmem:[%s1384 + $0x14] sm:$0xf] %v1357
        %1391 = vst [vmem:[%s1384 + $0x18] sm:$0xf] %v1358
        %1392 = vst [vmem:[%s1384 + $0x1c] sm:$0xf] %v1359
        %1393 = vst [vmem:[%s1384 + $0x20] sm:$0xf] %v1360
        %1394 = vst [vmem:[%s1384 + $0x24] sm:$0xf] %v1361
        %1395 = vst [vmem:[%s1384 + $0x28] sm:$0xf] %v1362
        %1396 = vst [vmem:[%s1384 + $0x2c] sm:$0xf] %v1363
        %1397 = vst [vmem:[%s1384 + $0x30] sm:$0xf] %v1364
        %1398 = vst [vmem:[%s1384 + $0x34] sm:$0xf] %v1365
        %1399 = vst [vmem:[%s1384 + $0x38] sm:$0xf] %v1366
        %1400 = vst [vmem:[%s1384 + $0x3c] sm:$0xf] %v1367
        %s1401 = sand.u32 %s72, 1
        %s1402 = scalar_lea.sflag [#allocation4], %s1401
        %s1403 = sand.u32 %s72, 1
        %s1404 = smul.addr %s1403, 192
        %s1405 = scalar_lea.vmem [#allocation5], %s1404
        // Predicated region
        $region33: #{tpu_custom_call.1} parent=27 // pred_check
          %p1406 = pneg %p82
        $region34: #{tpu_custom_call.1} parent=27 // pred_check_branch
          %1408 = sbr.rel (%p1406) target = $region36
        $region35: #{tpu_custom_call.1} parent=27 // pred_region
          #allocation7 [shape = 'u32[6]{0}', space=smem, size = 0x18, scoped, tag = 'DMA stride descriptor']
          %s1409 = smul.u32 16, %s17
          %s1411 = ssub.s32 3072, 3072
          %1412 = vsyncadd %s1402, %s1411
          %s1413 = smul.addr %s1409, 64
          %s1414 = scalar_lea.hbm %s2, %s1413
          %s1416 = sshll.u32 1, 14
          %s1417 = sxor.u32 4294967295, %s1416
          %s1420 = sshll.u32 7, 18
          %s1421 = sxor.u32 4294967295, %s1420
          %s1422 = sand.u32 0, %s1421
          %s1424 = sor.u32 %s1422, 0
          %s1426 = sshll.u32 3, 24
          %s1427 = sxor.u32 4294967295, %s1426
          %s1428 = sand.u32 %s1424, %s1427
          %s1430 = sor.u32 %s1428, 0
          %s1431 = sshll.u32 %s1405, 4
          %s1432 = int_to_ptr.vmem [resolvable:$true] %s1431
          %1438 = sst [smem:[#allocation7]] 1024
          %s1439 = scalar_lea.smem [#allocation7], 1
          %1440 = sst [smem:[%s1439]] 2048
          %s1441 = scalar_lea.smem [#allocation7], 2
          %1442 = sst [smem:[%s1441]] 16
          %s1443 = scalar_lea.smem [#allocation7], 3
          %1444 = sst [smem:[%s1443]] 64
          %s1445 = scalar_lea.smem [#allocation7], 4
          %1446 = sst [smem:[%s1445]] 64
          %s1447 = scalar_lea.smem [#allocation7], 5
          %1448 = sst [smem:[%s1447]] 4
          %1450 = dma.general %s1432, 3072, %s1414, %s1402, [#allocation6], [#allocation7], %s1430, 0
        $region36: #{tpu_custom_call.1} parent=27 // pred_fallthru
          _
      $region28: #{tpu_custom_call.1} parent=5 // pred_fallthru
        _
      %p1451 = scmp.le.s32.totalorder 2, %s12
      // Predicated region
      $region37: #{tpu_custom_call.1} parent=5 // pred_check
        %p1452 = pneg %p1451
      $region38: #{tpu_custom_call.1} parent=5 // pred_check_branch
        %1454 = sbr.rel (%p1452) target = $region40
      $region39: #{tpu_custom_call.1} parent=5 // pred_region
        %s1455 = ssub.s32 %s12, 2
        // Predicated region
        $region41: #{tpu_custom_call.1} parent=39 // pred_check
          %p1456 = pneg %p88
        $region42: #{tpu_custom_call.1} parent=39 // pred_check_branch
          %1458 = sbr.rel (%p1456) target = $region44
        $region43: #{tpu_custom_call.1} parent=39 // pred_region
          %s1459 = sand.u32 %s73, 1
          %s1460 = scalar_lea.sflag [#allocation4], %s1459
          %s1461 = sand.u32 %s73, 1
          %s1462 = smul.addr %s1461, 192
          %s1463 = scalar_lea.vmem [#allocation5], %s1462
          %1464 = dma.done %s1460, 3072
        $region44: #{tpu_custom_call.1} parent=39 // pred_fallthru
          _
      $region40: #{tpu_custom_call.1} parent=5 // pred_fallthru
        _
    $region6: #{tpu_custom_call.1} parent=1 // loop_footer
      %s16 = sadd.s32 1, %s12
    $region7: #{tpu_custom_call.1} parent=1 // loop_footer_branch
      %11 = sbr.rel target = $region3
    $region8: #{tpu_custom_call.1} parent=1 // loop_exit
      _
    %1465 = vsyncpa [#allocation3], 1
    %s1466 = scalar_lea.sflag [#allocation3], 1
    %1467 = vsyncpa %s1466, 1
    %1468 = vsyncpa [#allocation4], 1
    %s1469 = scalar_lea.sflag [#allocation4], 1
    %1470 = vsyncpa %s1469, 1

</llo_original>
